<compile_context>
chip_gen: v7x
topology: tpu7x:2x2x1
jax: 0.10.0
libtpu: 0.0.40
codegen_flags: <defaults>
</compile_context>

<pallas_src>
import functools

import jax
import jax.numpy as jnp
from jax.experimental import pallas as pl
from jax.experimental.pallas import tpu as pltpu


def _round_up(x, m):
    return ((x + m - 1) // m) * m


def _mlp_kernel(x_ref,
                w1_ref, b1_ref,
                w2_ref, b2_ref,
                w3_ref, b3_ref,
                w4_ref, b4_ref,
                w5_ref, b5_ref,
                o_ref):
    """Full LinearGenerator forward for one batch tile (all dims lane-padded)."""

    def hidden(h, w_ref, b_ref):
        # bf16 x bf16 -> f32 accumulate on the MXU, bias + ReLU in f32,
        # downcast to bf16 for the next matmul.
        a = jnp.dot(h, w_ref[...], preferred_element_type=jnp.float32) + b_ref[...]
        return jnp.maximum(a, 0.0).astype(jnp.bfloat16)

    h = hidden(x_ref[...], w1_ref, b1_ref)
    h = hidden(h, w2_ref, b2_ref)
    h = hidden(h, w3_ref, b3_ref)
    h = hidden(h, w4_ref, b4_ref)

    logits = jnp.dot(h, w5_ref[...], preferred_element_type=jnp.float32) + b5_ref[...]
    # sigmoid(x) = 1 / (1 + exp(-x)); reciprocal routed to the EUP slot.
    o_ref[...] = pl.reciprocal(1.0 + jnp.exp(-logits), approx=True).astype(o_ref.dtype)


def prepare_params(params):
    """Zero-pad every feature dim to a multiple of 128 and cast weights to bf16.

    params: w1..w5 of shape (in_dim, out_dim) and b1..b5 of shape (1, out_dim),
            all float32 (weights already transposed for x @ W).
    Returns kernel-ready padded params (weights bf16, biases f32).
    """
    prepared = {}
    for k in range(1, 6):
        w = params[f"w{k}"]
        b = params[f"b{k}"]
        in_p = _round_up(w.shape[0], 128)
        out_p = _round_up(w.shape[1], 128)
        w_p = jnp.zeros((in_p, out_p), jnp.bfloat16)
        w_p = w_p.at[: w.shape[0], : w.shape[1]].set(w.astype(jnp.bfloat16))
        b_p = jnp.zeros((1, out_p), jnp.float32)
        b_p = b_p.at[:, : b.shape[1]].set(b.astype(jnp.float32))
        prepared[f"w{k}"] = w_p
        prepared[f"b{k}"] = b_p
    return prepared


def linear_generator_forward(noise, prepared, *, im_dim, batch_tile=256):
    """LinearGenerator forward with a single Pallas TPU kernel.

    noise:    (N, z_dim) float32
    prepared: output of prepare_params (lane-padded bf16 weights, f32 biases)
    im_dim:   original (unpadded) output width, for the final slice
    """
    n, z_dim = noise.shape
    z_pad = prepared["w1"].shape[0]
    out_pad = prepared["w5"].shape[1]

    # Batch tile: large enough to fill the MXU rows; sublane-aligned; batch is
    # zero-padded up to a multiple of the tile (no hard divisibility assert).
    tm = _round_up(min(batch_tile, n), 8)
    n_pad = _round_up(n, tm)

    x = jnp.zeros((n_pad, z_pad), jnp.bfloat16)
    x = x.at[:n, :z_dim].set(noise.astype(jnp.bfloat16))

    in_specs = [pl.BlockSpec((tm, z_pad), lambda i: (i, 0))]
    operands = [x]
    for k in range(1, 6):
        w = prepared[f"w{k}"]
        b = prepared[f"b{k}"]
        # Grid-invariant whole-array blocks (constant index map).
        in_specs.append(pl.BlockSpec(w.shape, lambda i: (0, 0)))
        in_specs.append(pl.BlockSpec(b.shape, lambda i: (0, 0)))
        operands.append(w)
        operands.append(b)

    out_padded = pl.pallas_call(
        _mlp_kernel,
        out_shape=jax.ShapeDtypeStruct((n_pad, out_pad), jnp.float32),
        grid_spec=pltpu.PrefetchScalarGridSpec(
            num_scalar_prefetch=0,
            grid=(n_pad // tm,),
            in_specs=in_specs,
            out_specs=pl.BlockSpec((tm, out_pad), lambda i: (i, 0)),
        ),
        compiler_params=pltpu.CompilerParams(
            dimension_semantics=("parallel",),  # shards batch tiles across TCs (v7x)
        ),
    )(*operands)

    return out_padded[:n, :im_dim]


def init_linear_generator_params(key, z_dim=10, hidden_dim=32, im_dim=64):
    """PyTorch nn.Linear-style init: uniform(-1/sqrt(fan_in), 1/sqrt(fan_in)).
    Weights stored transposed to (in_dim, out_dim) for x @ W."""
    dims = [z_dim, hidden_dim, hidden_dim * 2, hidden_dim * 4,
            hidden_dim * 8, im_dim]
    params = {}
    keys = jax.random.split(key, 2 * (len(dims) - 1))
    for layer in range(len(dims) - 1):
        fan_in, fan_out = dims[layer], dims[layer + 1]
        bound = 1.0 / (fan_in ** 0.5)
        wk, bk = keys[2 * layer], keys[2 * layer + 1]
        params[f"w{layer + 1}"] = jax.random.uniform(
            wk, (fan_in, fan_out), jnp.float32, -bound, bound)
        params[f"b{layer + 1}"] = jax.random.uniform(
            bk, (1, fan_out), jnp.float32, -bound, bound)
    return params


def _reference_forward(noise, params):
    """Pure-JAX f32 reference (unpadded) for correctness checking."""
    h = noise
    for k in range(1, 5):
        h = jnp.maximum(h @ params[f"w{k}"] + params[f"b{k}"], 0.0)
    logits = h @ params["w5"] + params["b5"]
    return jax.nn.sigmoid(logits)


if __name__ == "__main__":
    # Small shapes consistent with the module: z_dim=10 (module default),
    # scaled-down hidden_dim=32 / im_dim=64. batch=256 with batch_tile=128
    # gives a 128-row MXU tile and 2 parallel grid steps (both v7x TCs busy).
    batch, z_dim, hidden_dim, im_dim = 256, 10, 32, 64

    root = jax.random.PRNGKey(0)
    k_params, k_noise = jax.random.split(root)
    params = init_linear_generator_params(
        k_params, z_dim=z_dim, hidden_dim=hidden_dim, im_dim=im_dim)
    noise = jax.random.normal(k_noise, (batch, z_dim), dtype=jnp.float32)

    prepared = prepare_params(params)   # pad + bf16-cast once, outside jit

    fwd = jax.jit(functools.partial(
        linear_generator_forward, im_dim=im_dim, batch_tile=128))
    out = fwd(noise, prepared)
    jax.block_until_ready(out)

    ref = _reference_forward(noise, params)
    assert out.shape == (batch, im_dim)
    # bf16 matmul operands + approx reciprocal -> looser tolerance than f32.
    assert jnp.allclose(out, ref, atol=2e-2, rtol=0.0), "mismatch vs reference"

    print("KERNEL_OK")
</pallas_src>

<mosaic_0001>
module attributes {stable_mosaic.version = 11 : i64} {
  func.func @_mlp_kernel(%arg0: i32, %arg1: memref<128x128xbf16, #tpu.memory_space<vmem>>, %arg2: memref<128x128xbf16, #tpu.memory_space<vmem>>, %arg3: memref<1x128xf32, #tpu.memory_space<vmem>>, %arg4: memref<128x128xbf16, #tpu.memory_space<vmem>>, %arg5: memref<1x128xf32, #tpu.memory_space<vmem>>, %arg6: memref<128x128xbf16, #tpu.memory_space<vmem>>, %arg7: memref<1x128xf32, #tpu.memory_space<vmem>>, %arg8: memref<128x256xbf16, #tpu.memory_space<vmem>>, %arg9: memref<1x256xf32, #tpu.memory_space<vmem>>, %arg10: memref<256x128xbf16, #tpu.memory_space<vmem>>, %arg11: memref<1x128xf32, #tpu.memory_space<vmem>>, %arg12: memref<128x128xf32, #tpu.memory_space<vmem>>) attributes {dimension_semantics = [#tpu.dimension_semantics<parallel>], iteration_bounds = array<i64: 2>, scalar_prefetch = 0 : i64, scratch_operands = 0 : i64, tpu.core_type = #tpu.core_type<tc>, window_params = [{transform_indices = @transform_0, window_bounds = array<i64: 128, 128>}, {pipeline_mode = #tpu.pipeline_mode<synchronous>, transform_indices = @transform_1, window_bounds = array<i64: 128, 128>}, {pipeline_mode = #tpu.pipeline_mode<synchronous>, transform_indices = @transform_2, window_bounds = array<i64: 1, 128>}, {pipeline_mode = #tpu.pipeline_mode<synchronous>, transform_indices = @transform_3, window_bounds = array<i64: 128, 128>}, {pipeline_mode = #tpu.pipeline_mode<synchronous>, transform_indices = @transform_4, window_bounds = array<i64: 1, 128>}, {pipeline_mode = #tpu.pipeline_mode<synchronous>, transform_indices = @transform_5, window_bounds = array<i64: 128, 128>}, {pipeline_mode = #tpu.pipeline_mode<synchronous>, transform_indices = @transform_6, window_bounds = array<i64: 1, 128>}, {pipeline_mode = #tpu.pipeline_mode<synchronous>, transform_indices = @transform_7, window_bounds = array<i64: 128, 256>}, {pipeline_mode = #tpu.pipeline_mode<synchronous>, transform_indices = @transform_8, window_bounds = array<i64: 1, 256>}, {pipeline_mode = #tpu.pipeline_mode<synchronous>, transform_indices = @transform_9, window_bounds = array<i64: 256, 128>}, {pipeline_mode = #tpu.pipeline_mode<synchronous>, transform_indices = @transform_10, window_bounds = array<i64: 1, 128>}, {transform_indices = @transform_11, window_bounds = array<i64: 128, 128>}]} {
    %c0 = arith.constant 0 : index
    %c0_0 = arith.constant 0 : index
    %0 = vector.load %arg1[%c0, %c0_0] : memref<128x128xbf16, #tpu.memory_space<vmem>>, vector<128x128xbf16>
    %c0_1 = arith.constant 0 : index
    %c0_2 = arith.constant 0 : index
    %1 = vector.load %arg2[%c0_1, %c0_2] : memref<128x128xbf16, #tpu.memory_space<vmem>>, vector<128x128xbf16>
    %cst = arith.constant dense<0.000000e+00> : vector<128x128xf32>
    %2 = tpu.matmul %0, %1, %cst {dimension_numbers = #tpu.dot_dimension_numbers<[1], [0], [0], [1], [0, 0, 1, 1], [], []>} : vector<128x128xbf16>, vector<128x128xbf16>, vector<128x128xf32> -> vector<128x128xf32>
    %c0_3 = arith.constant 0 : index
    %c0_4 = arith.constant 0 : index
    %3 = vector.load %arg3[%c0_3, %c0_4] : memref<1x128xf32, #tpu.memory_space<vmem>>, vector<1x128xf32>
    %4 = vector.broadcast %3 : vector<1x128xf32> to vector<128x128xf32>
    %5 = arith.addf %2, %4 : vector<128x128xf32>
    %cst_5 = arith.constant 0.000000e+00 : f32
    %6 = vector.broadcast %cst_5 : f32 to vector<128x128xf32>
    %7 = arith.maximumf %5, %6 : vector<128x128xf32>
    %8 = arith.truncf %7 : vector<128x128xf32> to vector<128x128xbf16>
    %c0_6 = arith.constant 0 : index
    %c0_7 = arith.constant 0 : index
    %9 = vector.load %arg4[%c0_6, %c0_7] : memref<128x128xbf16, #tpu.memory_space<vmem>>, vector<128x128xbf16>
    %cst_8 = arith.constant dense<0.000000e+00> : vector<128x128xf32>
    %10 = tpu.matmul %8, %9, %cst_8 {dimension_numbers = #tpu.dot_dimension_numbers<[1], [0], [0], [1], [0, 0, 1, 1], [], []>} : vector<128x128xbf16>, vector<128x128xbf16>, vector<128x128xf32> -> vector<128x128xf32>
    %c0_9 = arith.constant 0 : index
    %c0_10 = arith.constant 0 : index
    %11 = vector.load %arg5[%c0_9, %c0_10] : memref<1x128xf32, #tpu.memory_space<vmem>>, vector<1x128xf32>
    %12 = vector.broadcast %11 : vector<1x128xf32> to vector<128x128xf32>
    %13 = arith.addf %10, %12 : vector<128x128xf32>
    %cst_11 = arith.constant 0.000000e+00 : f32
    %14 = vector.broadcast %cst_11 : f32 to vector<128x128xf32>
    %15 = arith.maximumf %13, %14 : vector<128x128xf32>
    %16 = arith.truncf %15 : vector<128x128xf32> to vector<128x128xbf16>
    %c0_12 = arith.constant 0 : index
    %c0_13 = arith.constant 0 : index
    %17 = vector.load %arg6[%c0_12, %c0_13] : memref<128x128xbf16, #tpu.memory_space<vmem>>, vector<128x128xbf16>
    %cst_14 = arith.constant dense<0.000000e+00> : vector<128x128xf32>
    %18 = tpu.matmul %16, %17, %cst_14 {dimension_numbers = #tpu.dot_dimension_numbers<[1], [0], [0], [1], [0, 0, 1, 1], [], []>} : vector<128x128xbf16>, vector<128x128xbf16>, vector<128x128xf32> -> vector<128x128xf32>
    %c0_15 = arith.constant 0 : index
    %c0_16 = arith.constant 0 : index
    %19 = vector.load %arg7[%c0_15, %c0_16] : memref<1x128xf32, #tpu.memory_space<vmem>>, vector<1x128xf32>
    %20 = vector.broadcast %19 : vector<1x128xf32> to vector<128x128xf32>
    %21 = arith.addf %18, %20 : vector<128x128xf32>
    %cst_17 = arith.constant 0.000000e+00 : f32
    %22 = vector.broadcast %cst_17 : f32 to vector<128x128xf32>
    %23 = arith.maximumf %21, %22 : vector<128x128xf32>
    %24 = arith.truncf %23 : vector<128x128xf32> to vector<128x128xbf16>
    %c0_18 = arith.constant 0 : index
    %c0_19 = arith.constant 0 : index
    %25 = vector.load %arg8[%c0_18, %c0_19] : memref<128x256xbf16, #tpu.memory_space<vmem>>, vector<128x256xbf16>
    %cst_20 = arith.constant dense<0.000000e+00> : vector<128x256xf32>
    %26 = tpu.matmul %24, %25, %cst_20 {dimension_numbers = #tpu.dot_dimension_numbers<[1], [0], [0], [1], [0, 0, 1, 1], [], []>} : vector<128x128xbf16>, vector<128x256xbf16>, vector<128x256xf32> -> vector<128x256xf32>
    %c0_21 = arith.constant 0 : index
    %c0_22 = arith.constant 0 : index
    %27 = vector.load %arg9[%c0_21, %c0_22] : memref<1x256xf32, #tpu.memory_space<vmem>>, vector<1x256xf32>
    %28 = vector.broadcast %27 : vector<1x256xf32> to vector<128x256xf32>
    %29 = arith.addf %26, %28 : vector<128x256xf32>
    %cst_23 = arith.constant 0.000000e+00 : f32
    %30 = vector.broadcast %cst_23 : f32 to vector<128x256xf32>
    %31 = arith.maximumf %29, %30 : vector<128x256xf32>
    %32 = arith.truncf %31 : vector<128x256xf32> to vector<128x256xbf16>
    %c0_24 = arith.constant 0 : index
    %c0_25 = arith.constant 0 : index
    %33 = vector.load %arg10[%c0_24, %c0_25] : memref<256x128xbf16, #tpu.memory_space<vmem>>, vector<256x128xbf16>
    %cst_26 = arith.constant dense<0.000000e+00> : vector<128x128xf32>
    %34 = tpu.matmul %32, %33, %cst_26 {dimension_numbers = #tpu.dot_dimension_numbers<[1], [0], [0], [1], [0, 0, 1, 1], [], []>} : vector<128x256xbf16>, vector<256x128xbf16>, vector<128x128xf32> -> vector<128x128xf32>
    %c0_27 = arith.constant 0 : index
    %c0_28 = arith.constant 0 : index
    %35 = vector.load %arg11[%c0_27, %c0_28] : memref<1x128xf32, #tpu.memory_space<vmem>>, vector<1x128xf32>
    %36 = vector.broadcast %35 : vector<1x128xf32> to vector<128x128xf32>
    %37 = arith.addf %34, %36 : vector<128x128xf32>
    %cst_29 = arith.constant 0.000000e+00 : f32
    %38 = vector.broadcast %cst_29 : f32 to vector<128x128xf32>
    %39 = arith.subf %38, %37 : vector<128x128xf32>
    %40 = math.exp %39 : vector<128x128xf32>
    %cst_30 = arith.constant 1.000000e+00 : f32
    %41 = vector.broadcast %cst_30 : f32 to vector<128x128xf32>
    %42 = arith.addf %41, %40 : vector<128x128xf32>
    %43 = tpu.reciprocal %42 {approx = true} : vector<128x128xf32> -> vector<128x128xf32>
    %c0_31 = arith.constant 0 : index
    %c0_32 = arith.constant 0 : index
    %44 = vector.load %arg12[%c0_31, %c0_32] : memref<128x128xf32, #tpu.memory_space<vmem>>, vector<128x128xf32>
    tpu.vector_store %arg12[%c0_31, %c0_32], %43 {strides = array<i32>} : memref<128x128xf32, #tpu.memory_space<vmem>>, vector<128x128xf32>,
    return
  }
  func.func @transform_0(%arg0: i32) -> (i32, i32) {
    %c0_i32 = arith.constant 0 : i32
    %c0_i32_0 = arith.constant 0 : i32
    return %arg0, %c0_i32 : i32, i32
  }
  func.func @transform_1(%arg0: i32) -> (i32, i32) {
    %c0_i32 = arith.constant 0 : i32
    %c0_i32_0 = arith.constant 0 : i32
    %c0_i32_1 = arith.constant 0 : i32
    return %c0_i32, %c0_i32_0 : i32, i32
  }
  func.func @transform_2(%arg0: i32) -> (i32, i32) {
    %c0_i32 = arith.constant 0 : i32
    %c0_i32_0 = arith.constant 0 : i32
    %c0_i32_1 = arith.constant 0 : i32
    return %c0_i32, %c0_i32_0 : i32, i32
  }
  func.func @transform_3(%arg0: i32) -> (i32, i32) {
    %c0_i32 = arith.constant 0 : i32
    %c0_i32_0 = arith.constant 0 : i32
    %c0_i32_1 = arith.constant 0 : i32
    return %c0_i32, %c0_i32_0 : i32, i32
  }
  func.func @transform_4(%arg0: i32) -> (i32, i32) {
    %c0_i32 = arith.constant 0 : i32
    %c0_i32_0 = arith.constant 0 : i32
    %c0_i32_1 = arith.constant 0 : i32
    return %c0_i32, %c0_i32_0 : i32, i32
  }
  func.func @transform_5(%arg0: i32) -> (i32, i32) {
    %c0_i32 = arith.constant 0 : i32
    %c0_i32_0 = arith.constant 0 : i32
    %c0_i32_1 = arith.constant 0 : i32
    return %c0_i32, %c0_i32_0 : i32, i32
  }
  func.func @transform_6(%arg0: i32) -> (i32, i32) {
    %c0_i32 = arith.constant 0 : i32
    %c0_i32_0 = arith.constant 0 : i32
    %c0_i32_1 = arith.constant 0 : i32
    return %c0_i32, %c0_i32_0 : i32, i32
  }
  func.func @transform_7(%arg0: i32) -> (i32, i32) {
    %c0_i32 = arith.constant 0 : i32
    %c0_i32_0 = arith.constant 0 : i32
    %c0_i32_1 = arith.constant 0 : i32
    return %c0_i32, %c0_i32_0 : i32, i32
  }
  func.func @transform_8(%arg0: i32) -> (i32, i32) {
    %c0_i32 = arith.constant 0 : i32
    %c0_i32_0 = arith.constant 0 : i32
    %c0_i32_1 = arith.constant 0 : i32
    return %c0_i32, %c0_i32_0 : i32, i32
  }
  func.func @transform_9(%arg0: i32) -> (i32, i32) {
    %c0_i32 = arith.constant 0 : i32
    %c0_i32_0 = arith.constant 0 : i32
    %c0_i32_1 = arith.constant 0 : i32
    return %c0_i32, %c0_i32_0 : i32, i32
  }
  func.func @transform_10(%arg0: i32) -> (i32, i32) {
    %c0_i32 = arith.constant 0 : i32
    %c0_i32_0 = arith.constant 0 : i32
    %c0_i32_1 = arith.constant 0 : i32
    return %c0_i32, %c0_i32_0 : i32, i32
  }
  func.func @transform_11(%arg0: i32) -> (i32, i32) {
    %c0_i32 = arith.constant 0 : i32
    %c0_i32_0 = arith.constant 0 : i32
    return %arg0, %c0_i32 : i32, i32
  }
}

</mosaic_0001>

<llo_original>
// kernel: linear_generator_forward.1
$region0: #{linear_generator_forward.1}
  #allocation0 [shape = 'u32[]', space=smem, size = 0x4, offset = 0x4, fixed_abs, tag = 'smem constant byte address 0x4 - core index']
  #allocation1 [shape = 'u32[144,128]{1,0:T(1,128)}', space=vmem, size = 0x12000, scoped, tag = 'internal scratch']
  %s0 = inlined_call_operand.vmem [shape: bf16[256,128], index: 0, kind: input, shape index: {}]
  %s1 = inlined_call_operand.vmem [shape: bf16[128,128], index: 1, kind: input, shape index: {}]
  %s2 = inlined_call_operand.vmem [shape: f32[1,128], index: 2, kind: input, shape index: {}]
  %s3 = inlined_call_operand.vmem [shape: bf16[128,128], index: 3, kind: input, shape index: {}]
  %s4 = inlined_call_operand.vmem [shape: f32[1,128], index: 4, kind: input, shape index: {}]
  %s5 = inlined_call_operand.vmem [shape: bf16[128,128], index: 5, kind: input, shape index: {}]
  %s6 = inlined_call_operand.vmem [shape: f32[1,128], index: 6, kind: input, shape index: {}]
  %s7 = inlined_call_operand.vmem [shape: bf16[128,256], index: 7, kind: input, shape index: {}]
  %s8 = inlined_call_operand.vmem [shape: f32[1,256], index: 8, kind: input, shape index: {}]
  %s9 = inlined_call_operand.vmem [shape: bf16[256,128], index: 9, kind: input, shape index: {}]
  %s10 = inlined_call_operand.vmem [shape: f32[1,128], index: 10, kind: input, shape index: {}]
  %s11 = inlined_call_operand.vmem [shape: f32[256,128], index: 11, kind: output, shape index: {}]
  %s12 = sld [smem:[#allocation0]]
  $region77: #{linear_generator_forward.1} parent=0
    _
  %s14 = ssub.s32 1, %s12
  %s15 = scalar_select 0, %s14, %s12
  loop: start=0, step=1, limit=4
  $region2: #{linear_generator_forward.1} parent=0 // loop_pre_header
    _
  $region3: #{linear_generator_forward.1} parent=0 // loop_header
    %s17 = sphi 0, %s21
    %p18 = scmp.ge.s32.totalorder %s17, 4
    %s27 = sphi 0, %s29
    %s30 = sphi 0, %s27
    %s31 = sphi 0, %s30
    %s47 = sphi 0, %s31
    %s51 = sphi 0, %s51
    %s53 = sphi 0, %s51
    %s54 = sphi 0, %s53
    %s68 = sphi 0, %s54
    %s72 = sphi 0, %s72
    %s74 = sphi 0, %s72
    %s75 = sphi 0, %s74
    %s89 = sphi 0, %s75
    %s93 = sphi 0, %s93
    %s95 = sphi 0, %s93
    %s96 = sphi 0, %s95
    %s110 = sphi 0, %s96
    %s114 = sphi 0, %s114
    %s116 = sphi 0, %s114
    %s117 = sphi 0, %s116
    %s131 = sphi 0, %s117
    %s135 = sphi 0, %s135
    %s137 = sphi 0, %s135
    %s138 = sphi 0, %s137
    %s152 = sphi 0, %s138
    %s156 = sphi 0, %s156
    %s158 = sphi 0, %s156
    %s159 = sphi 0, %s158
    %s173 = sphi 0, %s159
    %s177 = sphi 0, %s177
    %s179 = sphi 0, %s177
    %s180 = sphi 0, %s179
    %s194 = sphi 0, %s180
    %s198 = sphi 0, %s198
    %s200 = sphi 0, %s198
    %s201 = sphi 0, %s200
    %s215 = sphi 0, %s201
    %s219 = sphi 0, %s219
    %s221 = sphi 0, %s219
    %s222 = sphi 0, %s221
    %s236 = sphi 0, %s222
    %s240 = sphi 0, %s240
    %s242 = sphi 0, %s240
    %s243 = sphi 0, %s242
    %s257 = sphi 0, %s243
    %s263 = sphi 0, %s265
    %s266 = sphi 0, %s263
    %s267 = sphi 0, %s266
    %s283 = sphi 0, %s267
  $region4: #{linear_generator_forward.1} parent=0 // loop_header_branch
    %20 = sbr.rel (%p18) target = $region8
  $region5: #{linear_generator_forward.1} parent=0 // loop_body
    %s22 = ssub.s32 %s17, 1
    %s23 = ssub.s32 %s17, 2
    %s24 = sadd.s32 %s17, 1
    %s25 = ssub.s32 %s17, %s24
    %p26 = scmp.eq.s32.totalorder %s25, 0
    %s28 = sadd.s32 %s27, 1
    %s29 = scalar_select %p26, %s27, %s28
    %p32 = pneg %p26
    %p33 = scmp.eq.s32.totalorder %s17, 1
    %p34 = por %p32, %p33
    %p35 = scmp.ne.s32.totalorder %s27, %s30
    %p36 = scmp.eq.s32.totalorder %s17, 0
    %p37 = por %p35, %p36
    %p38 = scmp.ne.s32.totalorder %s27, %s30
    %p39 = scmp.eq.s32.totalorder %s22, 1
    %p40 = por %p38, %p39
    %p41 = scmp.ne.s32.totalorder %s30, %s31
    %p42 = scmp.eq.s32.totalorder %s22, 0
    %p43 = por %p41, %p42
    %p44 = scmp.ne.s32.totalorder %s30, %s31
    %p45 = scmp.eq.s32.totalorder %s23, 1
    %p46 = por %p44, %p45
    %p48 = scmp.ne.s32.totalorder %s31, %s47
    %p49 = scmp.eq.s32.totalorder %s23, 0
    %p50 = por %p48, %p49
    %s52 = sadd.s32 %s51, 1
    %p55 = scmp.eq.s32.totalorder %s17, 1
    %p56 = scmp.ne.s32.totalorder %s51, %s53
    %p57 = scmp.eq.s32.totalorder %s17, 0
    %p58 = por %p56, %p57
    %p59 = scmp.ne.s32.totalorder %s51, %s53
    %p60 = scmp.eq.s32.totalorder %s22, 1
    %p61 = por %p59, %p60
    %p62 = scmp.ne.s32.totalorder %s53, %s54
    %p63 = scmp.eq.s32.totalorder %s22, 0
    %p64 = por %p62, %p63
    %p65 = scmp.ne.s32.totalorder %s53, %s54
    %p66 = scmp.eq.s32.totalorder %s23, 1
    %p67 = por %p65, %p66
    %p69 = scmp.ne.s32.totalorder %s54, %s68
    %p70 = scmp.eq.s32.totalorder %s23, 0
    %p71 = por %p69, %p70
    %s73 = sadd.s32 %s72, 1
    %p76 = scmp.eq.s32.totalorder %s17, 1
    %p77 = scmp.ne.s32.totalorder %s72, %s74
    %p78 = scmp.eq.s32.totalorder %s17, 0
    %p79 = por %p77, %p78
    %p80 = scmp.ne.s32.totalorder %s72, %s74
    %p81 = scmp.eq.s32.totalorder %s22, 1
    %p82 = por %p80, %p81
    %p83 = scmp.ne.s32.totalorder %s74, %s75
    %p84 = scmp.eq.s32.totalorder %s22, 0
    %p85 = por %p83, %p84
    %p86 = scmp.ne.s32.totalorder %s74, %s75
    %p87 = scmp.eq.s32.totalorder %s23, 1
    %p88 = por %p86, %p87
    %p90 = scmp.ne.s32.totalorder %s75, %s89
    %p91 = scmp.eq.s32.totalorder %s23, 0
    %p92 = por %p90, %p91
    %s94 = sadd.s32 %s93, 1
    %p97 = scmp.eq.s32.totalorder %s17, 1
    %p98 = scmp.ne.s32.totalorder %s93, %s95
    %p99 = scmp.eq.s32.totalorder %s17, 0
    %p100 = por %p98, %p99
    %p101 = scmp.ne.s32.totalorder %s93, %s95
    %p102 = scmp.eq.s32.totalorder %s22, 1
    %p103 = por %p101, %p102
    %p104 = scmp.ne.s32.totalorder %s95, %s96
    %p105 = scmp.eq.s32.totalorder %s22, 0
    %p106 = por %p104, %p105
    %p107 = scmp.ne.s32.totalorder %s95, %s96
    %p108 = scmp.eq.s32.totalorder %s23, 1
    %p109 = por %p107, %p108
    %p111 = scmp.ne.s32.totalorder %s96, %s110
    %p112 = scmp.eq.s32.totalorder %s23, 0
    %p113 = por %p111, %p112
    %s115 = sadd.s32 %s114, 1
    %p118 = scmp.eq.s32.totalorder %s17, 1
    %p119 = scmp.ne.s32.totalorder %s114, %s116
    %p120 = scmp.eq.s32.totalorder %s17, 0
    %p121 = por %p119, %p120
    %p122 = scmp.ne.s32.totalorder %s114, %s116
    %p123 = scmp.eq.s32.totalorder %s22, 1
    %p124 = por %p122, %p123
    %p125 = scmp.ne.s32.totalorder %s116, %s117
    %p126 = scmp.eq.s32.totalorder %s22, 0
    %p127 = por %p125, %p126
    %p128 = scmp.ne.s32.totalorder %s116, %s117
    %p129 = scmp.eq.s32.totalorder %s23, 1
    %p130 = por %p128, %p129
    %p132 = scmp.ne.s32.totalorder %s117, %s131
    %p133 = scmp.eq.s32.totalorder %s23, 0
    %p134 = por %p132, %p133
    %s136 = sadd.s32 %s135, 1
    %p139 = scmp.eq.s32.totalorder %s17, 1
    %p140 = scmp.ne.s32.totalorder %s135, %s137
    %p141 = scmp.eq.s32.totalorder %s17, 0
    %p142 = por %p140, %p141
    %p143 = scmp.ne.s32.totalorder %s135, %s137
    %p144 = scmp.eq.s32.totalorder %s22, 1
    %p145 = por %p143, %p144
    %p146 = scmp.ne.s32.totalorder %s137, %s138
    %p147 = scmp.eq.s32.totalorder %s22, 0
    %p148 = por %p146, %p147
    %p149 = scmp.ne.s32.totalorder %s137, %s138
    %p150 = scmp.eq.s32.totalorder %s23, 1
    %p151 = por %p149, %p150
    %p153 = scmp.ne.s32.totalorder %s138, %s152
    %p154 = scmp.eq.s32.totalorder %s23, 0
    %p155 = por %p153, %p154
    %s157 = sadd.s32 %s156, 1
    %p160 = scmp.eq.s32.totalorder %s17, 1
    %p161 = scmp.ne.s32.totalorder %s156, %s158
    %p162 = scmp.eq.s32.totalorder %s17, 0
    %p163 = por %p161, %p162
    %p164 = scmp.ne.s32.totalorder %s156, %s158
    %p165 = scmp.eq.s32.totalorder %s22, 1
    %p166 = por %p164, %p165
    %p167 = scmp.ne.s32.totalorder %s158, %s159
    %p168 = scmp.eq.s32.totalorder %s22, 0
    %p169 = por %p167, %p168
    %p170 = scmp.ne.s32.totalorder %s158, %s159
    %p171 = scmp.eq.s32.totalorder %s23, 1
    %p172 = por %p170, %p171
    %p174 = scmp.ne.s32.totalorder %s159, %s173
    %p175 = scmp.eq.s32.totalorder %s23, 0
    %p176 = por %p174, %p175
    %s178 = sadd.s32 %s177, 1
    %p181 = scmp.eq.s32.totalorder %s17, 1
    %p182 = scmp.ne.s32.totalorder %s177, %s179
    %p183 = scmp.eq.s32.totalorder %s17, 0
    %p184 = por %p182, %p183
    %p185 = scmp.ne.s32.totalorder %s177, %s179
    %p186 = scmp.eq.s32.totalorder %s22, 1
    %p187 = por %p185, %p186
    %p188 = scmp.ne.s32.totalorder %s179, %s180
    %p189 = scmp.eq.s32.totalorder %s22, 0
    %p190 = por %p188, %p189
    %p191 = scmp.ne.s32.totalorder %s179, %s180
    %p192 = scmp.eq.s32.totalorder %s23, 1
    %p193 = por %p191, %p192
    %p195 = scmp.ne.s32.totalorder %s180, %s194
    %p196 = scmp.eq.s32.totalorder %s23, 0
    %p197 = por %p195, %p196
    %s199 = sadd.s32 %s198, 1
    %p202 = scmp.eq.s32.totalorder %s17, 1
    %p203 = scmp.ne.s32.totalorder %s198, %s200
    %p204 = scmp.eq.s32.totalorder %s17, 0
    %p205 = por %p203, %p204
    %p206 = scmp.ne.s32.totalorder %s198, %s200
    %p207 = scmp.eq.s32.totalorder %s22, 1
    %p208 = por %p206, %p207
    %p209 = scmp.ne.s32.totalorder %s200, %s201
    %p210 = scmp.eq.s32.totalorder %s22, 0
    %p211 = por %p209, %p210
    %p212 = scmp.ne.s32.totalorder %s200, %s201
    %p213 = scmp.eq.s32.totalorder %s23, 1
    %p214 = por %p212, %p213
    %p216 = scmp.ne.s32.totalorder %s201, %s215
    %p217 = scmp.eq.s32.totalorder %s23, 0
    %p218 = por %p216, %p217
    %s220 = sadd.s32 %s219, 1
    %p223 = scmp.eq.s32.totalorder %s17, 1
    %p224 = scmp.ne.s32.totalorder %s219, %s221
    %p225 = scmp.eq.s32.totalorder %s17, 0
    %p226 = por %p224, %p225
    %p227 = scmp.ne.s32.totalorder %s219, %s221
    %p228 = scmp.eq.s32.totalorder %s22, 1
    %p229 = por %p227, %p228
    %p230 = scmp.ne.s32.totalorder %s221, %s222
    %p231 = scmp.eq.s32.totalorder %s22, 0
    %p232 = por %p230, %p231
    %p233 = scmp.ne.s32.totalorder %s221, %s222
    %p234 = scmp.eq.s32.totalorder %s23, 1
    %p235 = por %p233, %p234
    %p237 = scmp.ne.s32.totalorder %s222, %s236
    %p238 = scmp.eq.s32.totalorder %s23, 0
    %p239 = por %p237, %p238
    %s241 = sadd.s32 %s240, 1
    %p244 = scmp.eq.s32.totalorder %s17, 1
    %p245 = scmp.ne.s32.totalorder %s240, %s242
    %p246 = scmp.eq.s32.totalorder %s17, 0
    %p247 = por %p245, %p246
    %p248 = scmp.ne.s32.totalorder %s240, %s242
    %p249 = scmp.eq.s32.totalorder %s22, 1
    %p250 = por %p248, %p249
    %p251 = scmp.ne.s32.totalorder %s242, %s243
    %p252 = scmp.eq.s32.totalorder %s22, 0
    %p253 = por %p251, %p252
    %p254 = scmp.ne.s32.totalorder %s242, %s243
    %p255 = scmp.eq.s32.totalorder %s23, 1
    %p256 = por %p254, %p255
    %p258 = scmp.ne.s32.totalorder %s243, %s257
    %p259 = scmp.eq.s32.totalorder %s23, 0
    %p260 = por %p258, %p259
    %s261 = ssub.s32 %s17, %s24
    %p262 = scmp.eq.s32.totalorder %s261, 0
    %s264 = sadd.s32 %s263, 1
    %s265 = scalar_select %p262, %s263, %s264
    %p268 = pneg %p262
    %p269 = scmp.eq.s32.totalorder %s17, 1
    %p270 = por %p268, %p269
    %p271 = scmp.ne.s32.totalorder %s263, %s266
    %p272 = scmp.eq.s32.totalorder %s17, 0
    %p273 = por %p271, %p272
    %p274 = scmp.ne.s32.totalorder %s263, %s266
    %p275 = scmp.eq.s32.totalorder %s22, 1
    %p276 = por %p274, %p275
    %p277 = scmp.ne.s32.totalorder %s266, %s267
    %p278 = scmp.eq.s32.totalorder %s22, 0
    %p279 = por %p277, %p278
    %p280 = scmp.ne.s32.totalorder %s266, %s267
    %p281 = scmp.eq.s32.totalorder %s23, 1
    %p282 = por %p280, %p281
    %p284 = scmp.ne.s32.totalorder %s267, %s283
    %p285 = scmp.eq.s32.totalorder %s23, 0
    %p286 = por %p284, %p285
    %p287 = scmp.le.s32.totalorder 1, %s17
    %p288 = scmp.lt.s32.totalorder %s17, 3
    %p289 = pnand %p287, %p288
    %p290 = pneg %p289
    // Predicated region
    $region9: #{linear_generator_forward.1} parent=5 // pred_check
      _
    $region10: #{linear_generator_forward.1} parent=5 // pred_check_branch
      %292 = sbr.rel (%p289) target = $region12
    $region11: #{linear_generator_forward.1} parent=5 // pred_region
      %s293 = ssub.s32 %s17, 1
      // Predicated region
      $region13: #{linear_generator_forward.1} parent=11 // pred_check
        %p294 = pneg %p64
      $region14: #{linear_generator_forward.1} parent=11 // pred_check_branch
        %296 = sbr.rel (%p294) target = $region16
      $region15: #{linear_generator_forward.1} parent=11 // pred_region
        _
      $region16: #{linear_generator_forward.1} parent=11 // pred_fallthru
        _
      // Predicated region
      $region17: #{linear_generator_forward.1} parent=11 // pred_check
        %p297 = pneg %p85
      $region18: #{linear_generator_forward.1} parent=11 // pred_check_branch
        %299 = sbr.rel (%p297) target = $region20
      $region19: #{linear_generator_forward.1} parent=11 // pred_region
        _
      $region20: #{linear_generator_forward.1} parent=11 // pred_fallthru
        _
      // Predicated region
      $region21: #{linear_generator_forward.1} parent=11 // pred_check
        %p300 = pneg %p106
      $region22: #{linear_generator_forward.1} parent=11 // pred_check_branch
        %302 = sbr.rel (%p300) target = $region24
      $region23: #{linear_generator_forward.1} parent=11 // pred_region
        _
      $region24: #{linear_generator_forward.1} parent=11 // pred_fallthru
        _
      // Predicated region
      $region25: #{linear_generator_forward.1} parent=11 // pred_check
        %p303 = pneg %p127
      $region26: #{linear_generator_forward.1} parent=11 // pred_check_branch
        %305 = sbr.rel (%p303) target = $region28
      $region27: #{linear_generator_forward.1} parent=11 // pred_region
        _
      $region28: #{linear_generator_forward.1} parent=11 // pred_fallthru
        _
      // Predicated region
      $region29: #{linear_generator_forward.1} parent=11 // pred_check
        %p306 = pneg %p148
      $region30: #{linear_generator_forward.1} parent=11 // pred_check_branch
        %308 = sbr.rel (%p306) target = $region32
      $region31: #{linear_generator_forward.1} parent=11 // pred_region
        _
      $region32: #{linear_generator_forward.1} parent=11 // pred_fallthru
        _
      // Predicated region
      $region33: #{linear_generator_forward.1} parent=11 // pred_check
        %p309 = pneg %p169
      $region34: #{linear_generator_forward.1} parent=11 // pred_check_branch
        %311 = sbr.rel (%p309) target = $region36
      $region35: #{linear_generator_forward.1} parent=11 // pred_region
        _
      $region36: #{linear_generator_forward.1} parent=11 // pred_fallthru
        _
      // Predicated region
      $region37: #{linear_generator_forward.1} parent=11 // pred_check
        %p312 = pneg %p190
      $region38: #{linear_generator_forward.1} parent=11 // pred_check_branch
        %314 = sbr.rel (%p312) target = $region40
      $region39: #{linear_generator_forward.1} parent=11 // pred_region
        _
      $region40: #{linear_generator_forward.1} parent=11 // pred_fallthru
        _
      // Predicated region
      $region41: #{linear_generator_forward.1} parent=11 // pred_check
        %p315 = pneg %p211
      $region42: #{linear_generator_forward.1} parent=11 // pred_check_branch
        %317 = sbr.rel (%p315) target = $region44
      $region43: #{linear_generator_forward.1} parent=11 // pred_region
        _
      $region44: #{linear_generator_forward.1} parent=11 // pred_fallthru
        _
      // Predicated region
      $region45: #{linear_generator_forward.1} parent=11 // pred_check
        %p318 = pneg %p232
      $region46: #{linear_generator_forward.1} parent=11 // pred_check_branch
        %320 = sbr.rel (%p318) target = $region48
      $region47: #{linear_generator_forward.1} parent=11 // pred_region
        _
      $region48: #{linear_generator_forward.1} parent=11 // pred_fallthru
        _
      // Predicated region
      $region49: #{linear_generator_forward.1} parent=11 // pred_check
        %p321 = pneg %p253
      $region50: #{linear_generator_forward.1} parent=11 // pred_check_branch
        %323 = sbr.rel (%p321) target = $region52
      $region51: #{linear_generator_forward.1} parent=11 // pred_region
        _
      $region52: #{linear_generator_forward.1} parent=11 // pred_fallthru
        _
    $region12: #{linear_generator_forward.1} parent=5 // pred_fallthru
      _
    %p324 = scmp.lt.s32.totalorder %s17, 2
    // Predicated region
    $region53: #{linear_generator_forward.1} parent=5 // pred_check
      %p325 = pneg %p324
    $region54: #{linear_generator_forward.1} parent=5 // pred_check_branch
      %327 = sbr.rel (%p325) target = $region56
    $region55: #{linear_generator_forward.1} parent=5 // pred_region
      // Predicated region
      $region57: #{linear_generator_forward.1} parent=55 // pred_check
        %p328 = pneg %p37
      $region58: #{linear_generator_forward.1} parent=55 // pred_check_branch
        %330 = sbr.rel (%p328) target = $region60
      $region59: #{linear_generator_forward.1} parent=55 // pred_region
        %s331 = smul.u32 16, %s17
        %p332 = scmp.lt.s32.totalorder %s331, 31
        %s333 = scalar_select %p332, %s331, 31
        %s334 = smul.addr %s333, 4
        %s335 = scalar_lea.vmem %s0, %s334
        %s336 = smul.u32 16, %s17
      $region60: #{linear_generator_forward.1} parent=55 // pred_fallthru
        _
    $region56: #{linear_generator_forward.1} parent=5 // pred_fallthru
      _
    %p337 = scmp.le.s32.totalorder 1, %s17
    %p338 = scmp.lt.s32.totalorder %s17, 3
    %p339 = pnand %p337, %p338
    %p340 = pneg %p339
    // Predicated region
    $region61: #{linear_generator_forward.1} parent=5 // pred_check
      _
    $region62: #{linear_generator_forward.1} parent=5 // pred_check_branch
      %342 = sbr.rel (%p339) target = $region64
    $region63: #{linear_generator_forward.1} parent=5 // pred_region
      %s343 = ssub.s32 %s17, 1
      %s344 = smul.u32 16, %s22
      %p345 = scmp.lt.s32.totalorder %s344, 31
      %s346 = scalar_select %p345, %s344, 31
      %s347 = smul.addr %s346, 4
      %s348 = scalar_lea.vmem %s0, %s347
      %p349 = pneg %p43
      %p350 = pneg %p40
      %p351 = pneg %p64
      %p352 = pneg %p61
      %p353 = pneg %p85
      %p354 = pneg %p82
      %p355 = pneg %p106
      %p356 = pneg %p103
      %p357 = pneg %p127
      %p358 = pneg %p124
      %p359 = pneg %p148
      %p360 = pneg %p145
      %p361 = pneg %p169
      %p362 = pneg %p166
      %p363 = pneg %p190
      %p364 = pneg %p187
      %p365 = pneg %p211
      %p366 = pneg %p208
      %p367 = pneg %p232
      %p368 = pneg %p229
      %p369 = pneg %p253
      %p370 = pneg %p250
      %p371 = pneg %p279
      %p372 = pneg %p276
      %s373 = smul.u32 16, %s22
      %p374 = scmp.lt.s32.totalorder %s373, 31
      %s375 = scalar_select %p374, %s373, 31
      %s376 = smul.addr %s375, 8
      %s377 = scalar_lea.vmem %s11, %s376
      %s378 = smul.u32 16, %s22
      %p379 = scmp.lt.s32.totalorder %s378, 31
      %s380 = scalar_select %p379, %s378, 31
      %s381 = smul.addr %s380, 4
      %s382 = scalar_lea.vmem %s0, %s381
      %s383 = smul.u32 16, %s22
      %s384 = smul.u32 16, %s22
      %p385 = scmp.lt.s32.totalorder %s384, 31
      %s386 = scalar_select %p385, %s384, 31
      %s387 = smul.addr %s386, 8
      %s388 = scalar_lea.vmem %s11, %s387
      %s389 = smul.u32 16, %s22
      %v391 = vld [vmem:[%s382] sm:$0xf]
      %v392 = vld [vmem:[%s382 + $0x4] sm:$0xf]
      %v393 = vld [vmem:[%s382 + $0x8] sm:$0xf]
      %v394 = vld [vmem:[%s382 + $0xc] sm:$0xf]
      %v395 = vld [vmem:[%s382 + $0x10] sm:$0xf]
      %v396 = vld [vmem:[%s382 + $0x14] sm:$0xf]
      %v397 = vld [vmem:[%s382 + $0x18] sm:$0xf]
      %v398 = vld [vmem:[%s382 + $0x1c] sm:$0xf]
      %v399 = vld [vmem:[%s382 + $0x20] sm:$0xf]
      %v400 = vld [vmem:[%s382 + $0x24] sm:$0xf]
      %v401 = vld [vmem:[%s382 + $0x28] sm:$0xf]
      %v402 = vld [vmem:[%s382 + $0x2c] sm:$0xf]
      %v403 = vld [vmem:[%s382 + $0x30] sm:$0xf]
      %v404 = vld [vmem:[%s382 + $0x34] sm:$0xf]
      %v405 = vld [vmem:[%s382 + $0x38] sm:$0xf]
      %v406 = vld [vmem:[%s382 + $0x3c] sm:$0xf]
      %v407 = vld [vmem:[%s1] sm:$0xf]
      %v408 = vld [vmem:[%s1 + $0x4] sm:$0xf]
      %v409 = vld [vmem:[%s1 + $0x8] sm:$0xf]
      %v410 = vld [vmem:[%s1 + $0xc] sm:$0xf]
      %v411 = vld [vmem:[%s1 + $0x10] sm:$0xf]
      %v412 = vld [vmem:[%s1 + $0x14] sm:$0xf]
      %v413 = vld [vmem:[%s1 + $0x18] sm:$0xf]
      %v414 = vld [vmem:[%s1 + $0x1c] sm:$0xf]
      %v415 = vld [vmem:[%s1 + $0x20] sm:$0xf]
      %v416 = vld [vmem:[%s1 + $0x24] sm:$0xf]
      %v417 = vld [vmem:[%s1 + $0x28] sm:$0xf]
      %v418 = vld [vmem:[%s1 + $0x2c] sm:$0xf]
      %v419 = vld [vmem:[%s1 + $0x30] sm:$0xf]
      %v420 = vld [vmem:[%s1 + $0x34] sm:$0xf]
      %v421 = vld [vmem:[%s1 + $0x38] sm:$0xf]
      %v422 = vld [vmem:[%s1 + $0x3c] sm:$0xf]
      %v423 = vld [vmem:[%s2] sm:$0x1]
      %v425 = vlaneseq
      %v426 = vshrl.u32 %v425, 7
      %v427 = vsub.s32 0, %v426
      %v428 = vrot.slane %v423, %v427
      %v446 = vunpack.c.l.b16 %v391
      %v447 = vunpack.c.l.b16 %v392
      %v448 = vunpack.c.l.b16 %v393
      %v449 = vunpack.c.l.b16 %v394
      %v450 = vunpack.c.l.b16 %v395
      %v451 = vunpack.c.l.b16 %v396
      %v452 = vunpack.c.l.b16 %v397
      %v453 = vunpack.c.l.b16 %v398
      %v454 = vunpack.c.l.b16 %v399
      %v455 = vunpack.c.l.b16 %v400
      %v456 = vunpack.c.l.b16 %v401
      %v457 = vunpack.c.l.b16 %v402
      %v458 = vunpack.c.l.b16 %v403
      %v459 = vunpack.c.l.b16 %v404
      %v460 = vunpack.c.l.b16 %v405
      %v461 = vunpack.c.l.b16 %v406
      %v462 = vpack.c.b16 %v447, %v446
      %v463 = vpack.c.b16 %v449, %v448
      %v464 = vpack.c.b16 %v451, %v450
      %v465 = vpack.c.b16 %v453, %v452
      %v466 = vpack.c.b16 %v455, %v454
      %v467 = vpack.c.b16 %v457, %v456
      %v468 = vpack.c.b16 %v459, %v458
      %v469 = vpack.c.b16 %v461, %v460
      %v494 = vunpack.c.l.b16 %v407
      %v495 = vunpack.c.l.b16 %v408
      %v496 = vunpack.c.l.b16 %v409
      %v497 = vunpack.c.l.b16 %v410
      %v498 = vunpack.c.l.b16 %v411
      %v499 = vunpack.c.l.b16 %v412
      %v500 = vunpack.c.l.b16 %v413
      %v501 = vunpack.c.l.b16 %v414
      %v502 = vunpack.c.l.b16 %v415
      %v503 = vunpack.c.l.b16 %v416
      %v504 = vunpack.c.l.b16 %v417
      %v505 = vunpack.c.l.b16 %v418
      %v506 = vunpack.c.l.b16 %v419
      %v507 = vunpack.c.l.b16 %v420
      %v508 = vunpack.c.l.b16 %v421
      %v509 = vunpack.c.l.b16 %v422
      %v510 = vpack.c.b16 %v495, %v494
      %v511 = vpack.c.b16 %v497, %v496
      %v512 = vpack.c.b16 %v499, %v498
      %v513 = vpack.c.b16 %v501, %v500
      %v514 = vpack.c.b16 %v503, %v502
      %v515 = vpack.c.b16 %v505, %v504
      %v516 = vpack.c.b16 %v507, %v506
      %v517 = vpack.c.b16 %v509, %v508
      %526 = vmatprep.subr.bf16.mxu0 0
      %527 = vmatpush1.bf16.msra.mxu0 %v510
      %528 = vmatprep.subr.bf16.mxu0 0
      %529 = vmatpush1.bf16.msra.mxu0 %v511
      %530 = vmatprep.subr.bf16.mxu0 0
      %531 = vmatpush1.bf16.msra.mxu0 %v512
      %532 = vmatprep.subr.bf16.mxu0 0
      %533 = vmatpush1.bf16.msra.mxu0 %v513
      %534 = vmatprep.subr.bf16.mxu0 0
      %535 = vmatpush1.bf16.msra.mxu0 %v514
      %536 = vmatprep.subr.bf16.mxu0 0
      %537 = vmatpush1.bf16.msra.mxu0 %v515
      %538 = vmatprep.subr.bf16.mxu0 0
      %539 = vmatpush1.bf16.msra.mxu0 %v516
      %540 = vmatprep.subr.bf16.mxu0 0
      %541 = vmatpush1.bf16.msra.mxu0 %v517
      %542 = vmatprep.subr.bf16.mxu0 0
      %543 = vmatpush1.bf16.msra.mxu0 0
      %544 = vmatprep.subr.bf16.mxu0 0
      %545 = vmatpush1.bf16.msra.mxu0 0
      %546 = vmatprep.subr.bf16.mxu0 0
      %547 = vmatpush1.bf16.msra.mxu0 0
      %548 = vmatprep.subr.bf16.mxu0 0
      %549 = vmatpush1.bf16.msra.mxu0 0
      %550 = vmatprep.subr.bf16.mxu0 0
      %551 = vmatpush1.bf16.msra.mxu0 0
      %552 = vmatprep.subr.bf16.mxu0 0
      %553 = vmatpush1.bf16.msra.mxu0 0
      %554 = vmatprep.subr.bf16.mxu0 0
      %555 = vmatpush1.bf16.msra.mxu0 0
      %556 = vmatprep.subr.bf16.mxu0 0
      %557 = vmatpush1.bf16.msra.mxu0 0
      %558 = vmatprep.mubr.bf16.mxu0 0
      %559 = vmatmul.mubr.bf16.gmra.mrb[0].mxu0 %v462
      %v560 = vpop.f32.mrb[0].mxu0
      %v561 = vadd.f32 %v428, %v560
      %v562 = vpop.f32.mrb[0].mxu0
      %v563 = vpop.f32.mrb[0].mxu0
      %v564 = vadd.f32 %v428, %v563
      %v565 = vpop.f32.mrb[0].mxu0
      %566 = vmatprep.mubr.bf16.mxu0 0
      %567 = vmatmul.mubr.bf16.gmra.mrb[0].mxu0 %v463
      %v568 = vpop.f32.mrb[0].mxu0
      %v569 = vadd.f32 %v428, %v568
      %v570 = vpop.f32.mrb[0].mxu0
      %v571 = vpop.f32.mrb[0].mxu0
      %v572 = vadd.f32 %v428, %v571
      %v573 = vpop.f32.mrb[0].mxu0
      %574 = vmatprep.mubr.bf16.mxu0 0
      %575 = vmatmul.mubr.bf16.gmra.mrb[0].mxu0 %v464
      %v576 = vpop.f32.mrb[0].mxu0
      %v577 = vadd.f32 %v428, %v576
      %v578 = vpop.f32.mrb[0].mxu0
      %v579 = vpop.f32.mrb[0].mxu0
      %v580 = vadd.f32 %v428, %v579
      %v581 = vpop.f32.mrb[0].mxu0
      %582 = vmatprep.mubr.bf16.mxu0 0
      %583 = vmatmul.mubr.bf16.gmra.mrb[0].mxu0 %v465
      %v584 = vpop.f32.mrb[0].mxu0
      %v585 = vadd.f32 %v428, %v584
      %v586 = vpop.f32.mrb[0].mxu0
      %v587 = vpop.f32.mrb[0].mxu0
      %v588 = vadd.f32 %v428, %v587
      %v589 = vpop.f32.mrb[0].mxu0
      %590 = vmatprep.mubr.bf16.mxu0 0
      %591 = vmatmul.mubr.bf16.gmra.mrb[0].mxu0 %v466
      %v592 = vpop.f32.mrb[0].mxu0
      %v593 = vadd.f32 %v428, %v592
      %v594 = vpop.f32.mrb[0].mxu0
      %v595 = vpop.f32.mrb[0].mxu0
      %v596 = vadd.f32 %v428, %v595
      %v597 = vpop.f32.mrb[0].mxu0
      %598 = vmatprep.mubr.bf16.mxu0 0
      %599 = vmatmul.mubr.bf16.gmra.mrb[0].mxu0 %v467
      %v600 = vpop.f32.mrb[0].mxu0
      %v601 = vadd.f32 %v428, %v600
      %v602 = vpop.f32.mrb[0].mxu0
      %v603 = vpop.f32.mrb[0].mxu0
      %v604 = vadd.f32 %v428, %v603
      %v605 = vpop.f32.mrb[0].mxu0
      %606 = vmatprep.mubr.bf16.mxu0 0
      %607 = vmatmul.mubr.bf16.gmra.mrb[0].mxu0 %v468
      %v608 = vpop.f32.mrb[0].mxu0
      %v609 = vadd.f32 %v428, %v608
      %v610 = vpop.f32.mrb[0].mxu0
      %v611 = vpop.f32.mrb[0].mxu0
      %v612 = vadd.f32 %v428, %v611
      %v613 = vpop.f32.mrb[0].mxu0
      %614 = vmatprep.mubr.bf16.mxu0 0
      %615 = vmatmul.mubr.bf16.gmra.mrb[0].mxu0 %v469
      %v616 = vpop.f32.mrb[0].mxu0
      %v617 = vadd.f32 %v428, %v616
      %v618 = vpop.f32.mrb[0].mxu0
      %v619 = vpop.f32.mrb[0].mxu0
      %v620 = vadd.f32 %v428, %v619
      %v621 = vpop.f32.mrb[0].mxu0
      %622 = vdwg.mxu0
      %v623 = vmax.f32 %v561, 0.0
      %v624 = vmax.f32 %v564, 0.0
      %v625 = vmax.f32 %v569, 0.0
      %v626 = vmax.f32 %v572, 0.0
      %v627 = vmax.f32 %v577, 0.0
      %v628 = vmax.f32 %v580, 0.0
      %v629 = vmax.f32 %v585, 0.0
      %v630 = vmax.f32 %v588, 0.0
      %v631 = vmax.f32 %v593, 0.0
      %v632 = vmax.f32 %v596, 0.0
      %v633 = vmax.f32 %v601, 0.0
      %v634 = vmax.f32 %v604, 0.0
      %v635 = vmax.f32 %v609, 0.0
      %v636 = vmax.f32 %v612, 0.0
      %v637 = vmax.f32 %v617, 0.0
      %v638 = vmax.f32 %v620, 0.0
      %v639 = vpack.c.bf16 %v624, %v623
      %v640 = vpack.c.bf16 %v626, %v625
      %v641 = vpack.c.bf16 %v628, %v627
      %v642 = vpack.c.bf16 %v630, %v629
      %v643 = vpack.c.bf16 %v632, %v631
      %v644 = vpack.c.bf16 %v634, %v633
      %v645 = vpack.c.bf16 %v636, %v635
      %v646 = vpack.c.bf16 %v638, %v637
      %v647 = vld [vmem:[%s3] sm:$0xf]
      %v648 = vld [vmem:[%s3 + $0x4] sm:$0xf]
      %v649 = vld [vmem:[%s3 + $0x8] sm:$0xf]
      %v650 = vld [vmem:[%s3 + $0xc] sm:$0xf]
      %v651 = vld [vmem:[%s3 + $0x10] sm:$0xf]
      %v652 = vld [vmem:[%s3 + $0x14] sm:$0xf]
      %v653 = vld [vmem:[%s3 + $0x18] sm:$0xf]
      %v654 = vld [vmem:[%s3 + $0x1c] sm:$0xf]
      %v655 = vld [vmem:[%s3 + $0x20] sm:$0xf]
      %v656 = vld [vmem:[%s3 + $0x24] sm:$0xf]
      %v657 = vld [vmem:[%s3 + $0x28] sm:$0xf]
      %v658 = vld [vmem:[%s3 + $0x2c] sm:$0xf]
      %v659 = vld [vmem:[%s3 + $0x30] sm:$0xf]
      %v660 = vld [vmem:[%s3 + $0x34] sm:$0xf]
      %v661 = vld [vmem:[%s3 + $0x38] sm:$0xf]
      %v662 = vld [vmem:[%s3 + $0x3c] sm:$0xf]
      %v663 = vld [vmem:[%s4] sm:$0x1]
      %v665 = vlaneseq
      %v666 = vshrl.u32 %v665, 7
      %v667 = vsub.s32 0, %v666
      %v668 = vrot.slane %v663, %v667
      %v686 = vunpack.c.l.b16 %v647
      %v687 = vunpack.c.l.b16 %v648
      %v688 = vunpack.c.l.b16 %v649
      %v689 = vunpack.c.l.b16 %v650
      %v690 = vunpack.c.l.b16 %v651
      %v691 = vunpack.c.l.b16 %v652
      %v692 = vunpack.c.l.b16 %v653
      %v693 = vunpack.c.l.b16 %v654
      %v694 = vunpack.c.l.b16 %v655
      %v695 = vunpack.c.l.b16 %v656
      %v696 = vunpack.c.l.b16 %v657
      %v697 = vunpack.c.l.b16 %v658
      %v698 = vunpack.c.l.b16 %v659
      %v699 = vunpack.c.l.b16 %v660
      %v700 = vunpack.c.l.b16 %v661
      %v701 = vunpack.c.l.b16 %v662
      %v702 = vpack.c.b16 %v687, %v686
      %v703 = vpack.c.b16 %v689, %v688
      %v704 = vpack.c.b16 %v691, %v690
      %v705 = vpack.c.b16 %v693, %v692
      %v706 = vpack.c.b16 %v695, %v694
      %v707 = vpack.c.b16 %v697, %v696
      %v708 = vpack.c.b16 %v699, %v698
      %v709 = vpack.c.b16 %v701, %v700
      %718 = vmatprep.subr.bf16.mxu0 0
      %719 = vmatpush1.bf16.msra.mxu0 %v702
      %720 = vmatprep.subr.bf16.mxu0 0
      %721 = vmatpush1.bf16.msra.mxu0 %v703
      %722 = vmatprep.subr.bf16.mxu0 0
      %723 = vmatpush1.bf16.msra.mxu0 %v704
      %724 = vmatprep.subr.bf16.mxu0 0
      %725 = vmatpush1.bf16.msra.mxu0 %v705
      %726 = vmatprep.subr.bf16.mxu0 0
      %727 = vmatpush1.bf16.msra.mxu0 %v706
      %728 = vmatprep.subr.bf16.mxu0 0
      %729 = vmatpush1.bf16.msra.mxu0 %v707
      %730 = vmatprep.subr.bf16.mxu0 0
      %731 = vmatpush1.bf16.msra.mxu0 %v708
      %732 = vmatprep.subr.bf16.mxu0 0
      %733 = vmatpush1.bf16.msra.mxu0 %v709
      %734 = vmatprep.subr.bf16.mxu0 0
      %735 = vmatpush1.bf16.msra.mxu0 0
      %736 = vmatprep.subr.bf16.mxu0 0
      %737 = vmatpush1.bf16.msra.mxu0 0
      %738 = vmatprep.subr.bf16.mxu0 0
      %739 = vmatpush1.bf16.msra.mxu0 0
      %740 = vmatprep.subr.bf16.mxu0 0
      %741 = vmatpush1.bf16.msra.mxu0 0
      %742 = vmatprep.subr.bf16.mxu0 0
      %743 = vmatpush1.bf16.msra.mxu0 0
      %744 = vmatprep.subr.bf16.mxu0 0
      %745 = vmatpush1.bf16.msra.mxu0 0
      %746 = vmatprep.subr.bf16.mxu0 0
      %747 = vmatpush1.bf16.msra.mxu0 0
      %748 = vmatprep.subr.bf16.mxu0 0
      %749 = vmatpush1.bf16.msra.mxu0 0
      %750 = vmatprep.mubr.bf16.mxu0 0
      %751 = vmatmul.mubr.bf16.gmra.mrb[0].mxu0 %v639
      %v752 = vpop.f32.mrb[0].mxu0
      %v753 = vadd.f32 %v668, %v752
      %v754 = vpop.f32.mrb[0].mxu0
      %v755 = vpop.f32.mrb[0].mxu0
      %v756 = vadd.f32 %v668, %v755
      %v757 = vpop.f32.mrb[0].mxu0
      %758 = vmatprep.mubr.bf16.mxu0 0
      %759 = vmatmul.mubr.bf16.gmra.mrb[0].mxu0 %v640
      %v760 = vpop.f32.mrb[0].mxu0
      %v761 = vadd.f32 %v668, %v760
      %v762 = vpop.f32.mrb[0].mxu0
      %v763 = vpop.f32.mrb[0].mxu0
      %v764 = vadd.f32 %v668, %v763
      %v765 = vpop.f32.mrb[0].mxu0
      %766 = vmatprep.mubr.bf16.mxu0 0
      %767 = vmatmul.mubr.bf16.gmra.mrb[0].mxu0 %v641
      %v768 = vpop.f32.mrb[0].mxu0
      %v769 = vadd.f32 %v668, %v768
      %v770 = vpop.f32.mrb[0].mxu0
      %v771 = vpop.f32.mrb[0].mxu0
      %v772 = vadd.f32 %v668, %v771
      %v773 = vpop.f32.mrb[0].mxu0
      %774 = vmatprep.mubr.bf16.mxu0 0
      %775 = vmatmul.mubr.bf16.gmra.mrb[0].mxu0 %v642
      %v776 = vpop.f32.mrb[0].mxu0
      %v777 = vadd.f32 %v668, %v776
      %v778 = vpop.f32.mrb[0].mxu0
      %v779 = vpop.f32.mrb[0].mxu0
      %v780 = vadd.f32 %v668, %v779
      %v781 = vpop.f32.mrb[0].mxu0
      %782 = vmatprep.mubr.bf16.mxu0 0
      %783 = vmatmul.mubr.bf16.gmra.mrb[0].mxu0 %v643
      %v784 = vpop.f32.mrb[0].mxu0
      %v785 = vadd.f32 %v668, %v784
      %v786 = vpop.f32.mrb[0].mxu0
      %v787 = vpop.f32.mrb[0].mxu0
      %v788 = vadd.f32 %v668, %v787
      %v789 = vpop.f32.mrb[0].mxu0
      %790 = vmatprep.mubr.bf16.mxu0 0
      %791 = vmatmul.mubr.bf16.gmra.mrb[0].mxu0 %v644
      %v792 = vpop.f32.mrb[0].mxu0
      %v793 = vadd.f32 %v668, %v792
      %v794 = vpop.f32.mrb[0].mxu0
      %v795 = vpop.f32.mrb[0].mxu0
      %v796 = vadd.f32 %v668, %v795
      %v797 = vpop.f32.mrb[0].mxu0
      %798 = vmatprep.mubr.bf16.mxu0 0
      %799 = vmatmul.mubr.bf16.gmra.mrb[0].mxu0 %v645
      %v800 = vpop.f32.mrb[0].mxu0
      %v801 = vadd.f32 %v668, %v800
      %v802 = vpop.f32.mrb[0].mxu0
      %v803 = vpop.f32.mrb[0].mxu0
      %v804 = vadd.f32 %v668, %v803
      %v805 = vpop.f32.mrb[0].mxu0
      %806 = vmatprep.mubr.bf16.mxu0 0
      %807 = vmatmul.mubr.bf16.gmra.mrb[0].mxu0 %v646
      %v808 = vpop.f32.mrb[0].mxu0
      %v809 = vadd.f32 %v668, %v808
      %v810 = vpop.f32.mrb[0].mxu0
      %v811 = vpop.f32.mrb[0].mxu0
      %v812 = vadd.f32 %v668, %v811
      %v813 = vpop.f32.mrb[0].mxu0
      %814 = vdwg.mxu0
      %v815 = vmax.f32 %v753, 0.0
      %v816 = vmax.f32 %v756, 0.0
      %v817 = vmax.f32 %v761, 0.0
      %v818 = vmax.f32 %v764, 0.0
      %v819 = vmax.f32 %v769, 0.0
      %v820 = vmax.f32 %v772, 0.0
      %v821 = vmax.f32 %v777, 0.0
      %v822 = vmax.f32 %v780, 0.0
      %v823 = vmax.f32 %v785, 0.0
      %v824 = vmax.f32 %v788, 0.0
      %v825 = vmax.f32 %v793, 0.0
      %v826 = vmax.f32 %v796, 0.0
      %v827 = vmax.f32 %v801, 0.0
      %v828 = vmax.f32 %v804, 0.0
      %v829 = vmax.f32 %v809, 0.0
      %v830 = vmax.f32 %v812, 0.0
      %v831 = vpack.c.bf16 %v816, %v815
      %v832 = vpack.c.bf16 %v818, %v817
      %v833 = vpack.c.bf16 %v820, %v819
      %v834 = vpack.c.bf16 %v822, %v821
      %v835 = vpack.c.bf16 %v824, %v823
      %v836 = vpack.c.bf16 %v826, %v825
      %v837 = vpack.c.bf16 %v828, %v827
      %v838 = vpack.c.bf16 %v830, %v829
      %v839 = vld [vmem:[%s5] sm:$0xf]
      %v840 = vld [vmem:[%s5 + $0x4] sm:$0xf]
      %v841 = vld [vmem:[%s5 + $0x8] sm:$0xf]
      %v842 = vld [vmem:[%s5 + $0xc] sm:$0xf]
      %v843 = vld [vmem:[%s5 + $0x10] sm:$0xf]
      %v844 = vld [vmem:[%s5 + $0x14] sm:$0xf]
      %v845 = vld [vmem:[%s5 + $0x18] sm:$0xf]
      %v846 = vld [vmem:[%s5 + $0x1c] sm:$0xf]
      %v847 = vld [vmem:[%s5 + $0x20] sm:$0xf]
      %v848 = vld [vmem:[%s5 + $0x24] sm:$0xf]
      %v849 = vld [vmem:[%s5 + $0x28] sm:$0xf]
      %v850 = vld [vmem:[%s5 + $0x2c] sm:$0xf]
      %v851 = vld [vmem:[%s5 + $0x30] sm:$0xf]
      %v852 = vld [vmem:[%s5 + $0x34] sm:$0xf]
      %v853 = vld [vmem:[%s5 + $0x38] sm:$0xf]
      %v854 = vld [vmem:[%s5 + $0x3c] sm:$0xf]
      %v855 = vld [vmem:[%s6] sm:$0x1]
      %v857 = vlaneseq
      %v858 = vshrl.u32 %v857, 7
      %v859 = vsub.s32 0, %v858
      %v860 = vrot.slane %v855, %v859
      %v878 = vunpack.c.l.b16 %v839
      %v879 = vunpack.c.l.b16 %v840
      %v880 = vunpack.c.l.b16 %v841
      %v881 = vunpack.c.l.b16 %v842
      %v882 = vunpack.c.l.b16 %v843
      %v883 = vunpack.c.l.b16 %v844
      %v884 = vunpack.c.l.b16 %v845
      %v885 = vunpack.c.l.b16 %v846
      %v886 = vunpack.c.l.b16 %v847
      %v887 = vunpack.c.l.b16 %v848
      %v888 = vunpack.c.l.b16 %v849
      %v889 = vunpack.c.l.b16 %v850
      %v890 = vunpack.c.l.b16 %v851
      %v891 = vunpack.c.l.b16 %v852
      %v892 = vunpack.c.l.b16 %v853
      %v893 = vunpack.c.l.b16 %v854
      %v894 = vpack.c.b16 %v879, %v878
      %v895 = vpack.c.b16 %v881, %v880
      %v896 = vpack.c.b16 %v883, %v882
      %v897 = vpack.c.b16 %v885, %v884
      %v898 = vpack.c.b16 %v887, %v886
      %v899 = vpack.c.b16 %v889, %v888
      %v900 = vpack.c.b16 %v891, %v890
      %v901 = vpack.c.b16 %v893, %v892
      %910 = vmatprep.subr.bf16.mxu0 0
      %911 = vmatpush1.bf16.msra.mxu0 %v894
      %912 = vmatprep.subr.bf16.mxu0 0
      %913 = vmatpush1.bf16.msra.mxu0 %v895
      %914 = vmatprep.subr.bf16.mxu0 0
      %915 = vmatpush1.bf16.msra.mxu0 %v896
      %916 = vmatprep.subr.bf16.mxu0 0
      %917 = vmatpush1.bf16.msra.mxu0 %v897
      %918 = vmatprep.subr.bf16.mxu0 0
      %919 = vmatpush1.bf16.msra.mxu0 %v898
      %920 = vmatprep.subr.bf16.mxu0 0
      %921 = vmatpush1.bf16.msra.mxu0 %v899
      %922 = vmatprep.subr.bf16.mxu0 0
      %923 = vmatpush1.bf16.msra.mxu0 %v900
      %924 = vmatprep.subr.bf16.mxu0 0
      %925 = vmatpush1.bf16.msra.mxu0 %v901
      %926 = vmatprep.subr.bf16.mxu0 0
      %927 = vmatpush1.bf16.msra.mxu0 0
      %928 = vmatprep.subr.bf16.mxu0 0
      %929 = vmatpush1.bf16.msra.mxu0 0
      %930 = vmatprep.subr.bf16.mxu0 0
      %931 = vmatpush1.bf16.msra.mxu0 0
      %932 = vmatprep.subr.bf16.mxu0 0
      %933 = vmatpush1.bf16.msra.mxu0 0
      %934 = vmatprep.subr.bf16.mxu0 0
      %935 = vmatpush1.bf16.msra.mxu0 0
      %936 = vmatprep.subr.bf16.mxu0 0
      %937 = vmatpush1.bf16.msra.mxu0 0
      %938 = vmatprep.subr.bf16.mxu0 0
      %939 = vmatpush1.bf16.msra.mxu0 0
      %940 = vmatprep.subr.bf16.mxu0 0
      %941 = vmatpush1.bf16.msra.mxu0 0
      %942 = vmatprep.mubr.bf16.mxu0 0
      %943 = vmatmul.mubr.bf16.gmra.mrb[0].mxu0 %v831
      %v944 = vpop.f32.mrb[0].mxu0
      %v945 = vadd.f32 %v860, %v944
      %v946 = vpop.f32.mrb[0].mxu0
      %v947 = vpop.f32.mrb[0].mxu0
      %v948 = vadd.f32 %v860, %v947
      %v949 = vpop.f32.mrb[0].mxu0
      %950 = vmatprep.mubr.bf16.mxu0 0
      %951 = vmatmul.mubr.bf16.gmra.mrb[0].mxu0 %v832
      %v952 = vpop.f32.mrb[0].mxu0
      %v953 = vadd.f32 %v860, %v952
      %v954 = vpop.f32.mrb[0].mxu0
      %v955 = vpop.f32.mrb[0].mxu0
      %v956 = vadd.f32 %v860, %v955
      %v957 = vpop.f32.mrb[0].mxu0
      %958 = vmatprep.mubr.bf16.mxu0 0
      %959 = vmatmul.mubr.bf16.gmra.mrb[0].mxu0 %v833
      %v960 = vpop.f32.mrb[0].mxu0
      %v961 = vadd.f32 %v860, %v960
      %v962 = vpop.f32.mrb[0].mxu0
      %v963 = vpop.f32.mrb[0].mxu0
      %v964 = vadd.f32 %v860, %v963
      %v965 = vpop.f32.mrb[0].mxu0
      %966 = vmatprep.mubr.bf16.mxu0 0
      %967 = vmatmul.mubr.bf16.gmra.mrb[0].mxu0 %v834
      %v968 = vpop.f32.mrb[0].mxu0
      %v969 = vadd.f32 %v860, %v968
      %v970 = vpop.f32.mrb[0].mxu0
      %v971 = vpop.f32.mrb[0].mxu0
      %v972 = vadd.f32 %v860, %v971
      %v973 = vpop.f32.mrb[0].mxu0
      %974 = vmatprep.mubr.bf16.mxu0 0
      %975 = vmatmul.mubr.bf16.gmra.mrb[0].mxu0 %v835
      %v976 = vpop.f32.mrb[0].mxu0
      %v977 = vadd.f32 %v860, %v976
      %v978 = vpop.f32.mrb[0].mxu0
      %v979 = vpop.f32.mrb[0].mxu0
      %v980 = vadd.f32 %v860, %v979
      %v981 = vpop.f32.mrb[0].mxu0
      %982 = vmatprep.mubr.bf16.mxu0 0
      %983 = vmatmul.mubr.bf16.gmra.mrb[0].mxu0 %v836
      %v984 = vpop.f32.mrb[0].mxu0
      %v985 = vadd.f32 %v860, %v984
      %v986 = vpop.f32.mrb[0].mxu0
      %v987 = vpop.f32.mrb[0].mxu0
      %v988 = vadd.f32 %v860, %v987
      %v989 = vpop.f32.mrb[0].mxu0
      %990 = vmatprep.mubr.bf16.mxu0 0
      %991 = vmatmul.mubr.bf16.gmra.mrb[0].mxu0 %v837
      %v992 = vpop.f32.mrb[0].mxu0
      %v993 = vadd.f32 %v860, %v992
      %v994 = vpop.f32.mrb[0].mxu0
      %v995 = vpop.f32.mrb[0].mxu0
      %v996 = vadd.f32 %v860, %v995
      %v997 = vpop.f32.mrb[0].mxu0
      %998 = vmatprep.mubr.bf16.mxu0 0
      %999 = vmatmul.mubr.bf16.gmra.mrb[0].mxu0 %v838
      %v1000 = vpop.f32.mrb[0].mxu0
      %v1001 = vadd.f32 %v860, %v1000
      %v1002 = vpop.f32.mrb[0].mxu0
      %v1003 = vpop.f32.mrb[0].mxu0
      %v1004 = vadd.f32 %v860, %v1003
      %v1005 = vpop.f32.mrb[0].mxu0
      %1006 = vdwg.mxu0
      %v1007 = vmax.f32 %v945, 0.0
      %v1008 = vmax.f32 %v948, 0.0
      %v1009 = vmax.f32 %v953, 0.0
      %v1010 = vmax.f32 %v956, 0.0
      %v1011 = vmax.f32 %v961, 0.0
      %v1012 = vmax.f32 %v964, 0.0
      %v1013 = vmax.f32 %v969, 0.0
      %v1014 = vmax.f32 %v972, 0.0
      %v1015 = vmax.f32 %v977, 0.0
      %v1016 = vmax.f32 %v980, 0.0
      %v1017 = vmax.f32 %v985, 0.0
      %v1018 = vmax.f32 %v988, 0.0
      %v1019 = vmax.f32 %v993, 0.0
      %v1020 = vmax.f32 %v996, 0.0
      %v1021 = vmax.f32 %v1001, 0.0
      %v1022 = vmax.f32 %v1004, 0.0
      %v1023 = vpack.c.bf16 %v1008, %v1007
      %v1024 = vpack.c.bf16 %v1010, %v1009
      %v1025 = vpack.c.bf16 %v1012, %v1011
      %v1026 = vpack.c.bf16 %v1014, %v1013
      %v1027 = vpack.c.bf16 %v1016, %v1015
      %v1028 = vpack.c.bf16 %v1018, %v1017
      %v1029 = vpack.c.bf16 %v1020, %v1019
      %v1030 = vpack.c.bf16 %v1022, %v1021
      %v1031 = vld [vmem:[%s7] sm:$0xff]
      %v1032 = vld [vmem:[%s7 + $0x8] sm:$0xff]
      %v1033 = vld [vmem:[%s7 + $0x10] sm:$0xff]
      %v1034 = vld [vmem:[%s7 + $0x18] sm:$0xff]
      %v1035 = vld [vmem:[%s7 + $0x20] sm:$0xff]
      %v1036 = vld [vmem:[%s7 + $0x28] sm:$0xff]
      %v1037 = vld [vmem:[%s7 + $0x30] sm:$0xff]
      %v1038 = vld [vmem:[%s7 + $0x38] sm:$0xff]
      %v1039 = vld [vmem:[%s7 + $0x40] sm:$0xff]
      %v1040 = vld [vmem:[%s7 + $0x48] sm:$0xff]
      %v1041 = vld [vmem:[%s7 + $0x50] sm:$0xff]
      %v1042 = vld [vmem:[%s7 + $0x58] sm:$0xff]
      %v1043 = vld [vmem:[%s7 + $0x60] sm:$0xff]
      %v1044 = vld [vmem:[%s7 + $0x68] sm:$0xff]
      %v1045 = vld [vmem:[%s7 + $0x70] sm:$0xff]
      %v1046 = vld [vmem:[%s7 + $0x78] sm:$0xff]
      %v1047 = vld [vmem:[%s8] sm:$0x3]
      %v1049 = vlaneseq
      %v1050 = vshrl.u32 %v1049, 7
      %v1051 = vsub.s32 0, %v1050
      %v1052 = vrot.slane %v1047, %v1051
      %v1053 = vlaneseq
      %v1054 = vshrl.u32 %v1053, 7
      %v1055 = vsub.s32 1, %v1054
      %v1056 = vrot.slane %v1047, %v1055
      %v1075 = vunpack.c.l.b16 %v1031
      %v1076 = vunpack.c.h.b16 %v1031
      %v1077 = vunpack.c.l.b16 %v1032
      %v1078 = vunpack.c.h.b16 %v1032
      %v1079 = vunpack.c.l.b16 %v1033
      %v1080 = vunpack.c.h.b16 %v1033
      %v1081 = vunpack.c.l.b16 %v1034
      %v1082 = vunpack.c.h.b16 %v1034
      %v1083 = vunpack.c.l.b16 %v1035
      %v1084 = vunpack.c.h.b16 %v1035
      %v1085 = vunpack.c.l.b16 %v1036
      %v1086 = vunpack.c.h.b16 %v1036
      %v1087 = vunpack.c.l.b16 %v1037
      %v1088 = vunpack.c.h.b16 %v1037
      %v1089 = vunpack.c.l.b16 %v1038
      %v1090 = vunpack.c.h.b16 %v1038
      %v1091 = vunpack.c.l.b16 %v1039
      %v1092 = vunpack.c.h.b16 %v1039
      %v1093 = vunpack.c.l.b16 %v1040
      %v1094 = vunpack.c.h.b16 %v1040
      %v1095 = vunpack.c.l.b16 %v1041
      %v1096 = vunpack.c.h.b16 %v1041
      %v1097 = vunpack.c.l.b16 %v1042
      %v1098 = vunpack.c.h.b16 %v1042
      %v1099 = vunpack.c.l.b16 %v1043
      %v1100 = vunpack.c.h.b16 %v1043
      %v1101 = vunpack.c.l.b16 %v1044
      %v1102 = vunpack.c.h.b16 %v1044
      %v1103 = vunpack.c.l.b16 %v1045
      %v1104 = vunpack.c.h.b16 %v1045
      %v1105 = vunpack.c.l.b16 %v1046
      %v1106 = vunpack.c.h.b16 %v1046
      %v1107 = vpack.c.b16 %v1077, %v1075
      %v1108 = vpack.c.b16 %v1078, %v1076
      %v1109 = vpack.c.b16 %v1081, %v1079
      %v1110 = vpack.c.b16 %v1082, %v1080
      %v1111 = vpack.c.b16 %v1085, %v1083
      %v1112 = vpack.c.b16 %v1086, %v1084
      %v1113 = vpack.c.b16 %v1089, %v1087
      %v1114 = vpack.c.b16 %v1090, %v1088
      %v1115 = vpack.c.b16 %v1093, %v1091
      %v1116 = vpack.c.b16 %v1094, %v1092
      %v1117 = vpack.c.b16 %v1097, %v1095
      %v1118 = vpack.c.b16 %v1098, %v1096
      %v1119 = vpack.c.b16 %v1101, %v1099
      %v1120 = vpack.c.b16 %v1102, %v1100
      %v1121 = vpack.c.b16 %v1105, %v1103
      %v1122 = vpack.c.b16 %v1106, %v1104
      %1139 = vmatprep.subr.bf16.mxu0 %v1108
      %1140 = vmatpush1.bf16.msra.mxu0 %v1107
      %1141 = vmatprep.subr.bf16.mxu0 %v1110
      %1142 = vmatpush1.bf16.msra.mxu0 %v1109
      %1143 = vmatprep.subr.bf16.mxu0 %v1112
      %1144 = vmatpush1.bf16.msra.mxu0 %v1111
      %1145 = vmatprep.subr.bf16.mxu0 %v1114
      %1146 = vmatpush1.bf16.msra.mxu0 %v1113
      %1147 = vmatprep.subr.bf16.mxu0 %v1116
      %1148 = vmatpush1.bf16.msra.mxu0 %v1115
      %1149 = vmatprep.subr.bf16.mxu0 %v1118
      %1150 = vmatpush1.bf16.msra.mxu0 %v1117
      %1151 = vmatprep.subr.bf16.mxu0 %v1120
      %1152 = vmatpush1.bf16.msra.mxu0 %v1119
      %1153 = vmatprep.subr.bf16.mxu0 %v1122
      %1154 = vmatpush1.bf16.msra.mxu0 %v1121
      %1155 = vmatprep.subr.bf16.mxu0 0
      %1156 = vmatpush1.bf16.msra.mxu0 0
      %1157 = vmatprep.subr.bf16.mxu0 0
      %1158 = vmatpush1.bf16.msra.mxu0 0
      %1159 = vmatprep.subr.bf16.mxu0 0
      %1160 = vmatpush1.bf16.msra.mxu0 0
      %1161 = vmatprep.subr.bf16.mxu0 0
      %1162 = vmatpush1.bf16.msra.mxu0 0
      %1163 = vmatprep.subr.bf16.mxu0 0
      %1164 = vmatpush1.bf16.msra.mxu0 0
      %1165 = vmatprep.subr.bf16.mxu0 0
      %1166 = vmatpush1.bf16.msra.mxu0 0
      %1167 = vmatprep.subr.bf16.mxu0 0
      %1168 = vmatpush1.bf16.msra.mxu0 0
      %1169 = vmatprep.subr.bf16.mxu0 0
      %1170 = vmatpush1.bf16.msra.mxu0 0
      %1171 = vmatprep.mubr.bf16.mxu0 0
      %1172 = vmatmul.mubr.bf16.gmra.mrb[0].mxu0 %v1023
      %v1173 = vpop.f32.mrb[0].mxu0
      %v1174 = vadd.f32 %v1052, %v1173
      %v1175 = vpop.f32.mrb[0].mxu0
      %v1176 = vadd.f32 %v1056, %v1175
      %v1177 = vpop.f32.mrb[0].mxu0
      %v1178 = vadd.f32 %v1052, %v1177
      %v1179 = vpop.f32.mrb[0].mxu0
      %v1180 = vadd.f32 %v1056, %v1179
      %1181 = vmatprep.mubr.bf16.mxu0 0
      %1182 = vmatmul.mubr.bf16.gmra.mrb[0].mxu0 %v1024
      %v1183 = vpop.f32.mrb[0].mxu0
      %v1184 = vadd.f32 %v1052, %v1183
      %v1185 = vpop.f32.mrb[0].mxu0
      %v1186 = vadd.f32 %v1056, %v1185
      %v1187 = vpop.f32.mrb[0].mxu0
      %v1188 = vadd.f32 %v1052, %v1187
      %v1189 = vpop.f32.mrb[0].mxu0
      %v1190 = vadd.f32 %v1056, %v1189
      %1191 = vmatprep.mubr.bf16.mxu0 0
      %1192 = vmatmul.mubr.bf16.gmra.mrb[0].mxu0 %v1025
      %v1193 = vpop.f32.mrb[0].mxu0
      %v1194 = vadd.f32 %v1052, %v1193
      %v1195 = vpop.f32.mrb[0].mxu0
      %v1196 = vadd.f32 %v1056, %v1195
      %v1197 = vpop.f32.mrb[0].mxu0
      %v1198 = vadd.f32 %v1052, %v1197
      %v1199 = vpop.f32.mrb[0].mxu0
      %v1200 = vadd.f32 %v1056, %v1199
      %1201 = vmatprep.mubr.bf16.mxu0 0
      %1202 = vmatmul.mubr.bf16.gmra.mrb[0].mxu0 %v1026
      %v1203 = vpop.f32.mrb[0].mxu0
      %v1204 = vadd.f32 %v1052, %v1203
      %v1205 = vpop.f32.mrb[0].mxu0
      %v1206 = vadd.f32 %v1056, %v1205
      %v1207 = vpop.f32.mrb[0].mxu0
      %v1208 = vadd.f32 %v1052, %v1207
      %v1209 = vpop.f32.mrb[0].mxu0
      %v1210 = vadd.f32 %v1056, %v1209
      %1211 = vmatprep.mubr.bf16.mxu0 0
      %1212 = vmatmul.mubr.bf16.gmra.mrb[0].mxu0 %v1027
      %v1213 = vpop.f32.mrb[0].mxu0
      %v1214 = vadd.f32 %v1052, %v1213
      %v1215 = vpop.f32.mrb[0].mxu0
      %v1216 = vadd.f32 %v1056, %v1215
      %v1217 = vpop.f32.mrb[0].mxu0
      %v1218 = vadd.f32 %v1052, %v1217
      %v1219 = vpop.f32.mrb[0].mxu0
      %v1220 = vadd.f32 %v1056, %v1219
      %1221 = vmatprep.mubr.bf16.mxu0 0
      %1222 = vmatmul.mubr.bf16.gmra.mrb[0].mxu0 %v1028
      %v1223 = vpop.f32.mrb[0].mxu0
      %v1224 = vadd.f32 %v1052, %v1223
      %v1225 = vpop.f32.mrb[0].mxu0
      %v1226 = vadd.f32 %v1056, %v1225
      %v1227 = vpop.f32.mrb[0].mxu0
      %v1228 = vadd.f32 %v1052, %v1227
      %v1229 = vpop.f32.mrb[0].mxu0
      %v1230 = vadd.f32 %v1056, %v1229
      %1231 = vmatprep.mubr.bf16.mxu0 0
      %1232 = vmatmul.mubr.bf16.gmra.mrb[0].mxu0 %v1029
      %v1233 = vpop.f32.mrb[0].mxu0
      %v1234 = vadd.f32 %v1052, %v1233
      %v1235 = vpop.f32.mrb[0].mxu0
      %v1236 = vadd.f32 %v1056, %v1235
      %v1237 = vpop.f32.mrb[0].mxu0
      %v1238 = vadd.f32 %v1052, %v1237
      %v1239 = vpop.f32.mrb[0].mxu0
      %v1240 = vadd.f32 %v1056, %v1239
      %1241 = vmatprep.mubr.bf16.mxu0 0
      %1242 = vmatmul.mubr.bf16.gmra.mrb[0].mxu0 %v1030
      %v1243 = vpop.f32.mrb[0].mxu0
      %v1244 = vadd.f32 %v1052, %v1243
      %v1245 = vpop.f32.mrb[0].mxu0
      %v1246 = vadd.f32 %v1056, %v1245
      %v1247 = vpop.f32.mrb[0].mxu0
      %v1248 = vadd.f32 %v1052, %v1247
      %v1249 = vpop.f32.mrb[0].mxu0
      %v1250 = vadd.f32 %v1056, %v1249
      %1251 = vdwg.mxu0
      %v1252 = vmax.f32 %v1174, 0.0
      %v1253 = vmax.f32 %v1176, 0.0
      %v1254 = vmax.f32 %v1178, 0.0
      %v1255 = vmax.f32 %v1180, 0.0
      %v1256 = vmax.f32 %v1184, 0.0
      %v1257 = vmax.f32 %v1186, 0.0
      %v1258 = vmax.f32 %v1188, 0.0
      %v1259 = vmax.f32 %v1190, 0.0
      %v1260 = vmax.f32 %v1194, 0.0
      %v1261 = vmax.f32 %v1196, 0.0
      %v1262 = vmax.f32 %v1198, 0.0
      %v1263 = vmax.f32 %v1200, 0.0
      %v1264 = vmax.f32 %v1204, 0.0
      %v1265 = vmax.f32 %v1206, 0.0
      %v1266 = vmax.f32 %v1208, 0.0
      %v1267 = vmax.f32 %v1210, 0.0
      %v1268 = vmax.f32 %v1214, 0.0
      %v1269 = vmax.f32 %v1216, 0.0
      %v1270 = vmax.f32 %v1218, 0.0
      %v1271 = vmax.f32 %v1220, 0.0
      %v1272 = vmax.f32 %v1224, 0.0
      %v1273 = vmax.f32 %v1226, 0.0
      %v1274 = vmax.f32 %v1228, 0.0
      %v1275 = vmax.f32 %v1230, 0.0
      %v1276 = vmax.f32 %v1234, 0.0
      %v1277 = vmax.f32 %v1236, 0.0
      %v1278 = vmax.f32 %v1238, 0.0
      %v1279 = vmax.f32 %v1240, 0.0
      %v1280 = vmax.f32 %v1244, 0.0
      %v1281 = vmax.f32 %v1246, 0.0
      %v1282 = vmax.f32 %v1248, 0.0
      %v1283 = vmax.f32 %v1250, 0.0
      %v1284 = vpack.c.bf16 %v1254, %v1252
      %v1285 = vpack.c.bf16 %v1255, %v1253
      %v1286 = vpack.c.bf16 %v1258, %v1256
      %v1287 = vpack.c.bf16 %v1259, %v1257
      %v1288 = vpack.c.bf16 %v1262, %v1260
      %v1289 = vpack.c.bf16 %v1263, %v1261
      %v1290 = vpack.c.bf16 %v1266, %v1264
      %v1291 = vpack.c.bf16 %v1267, %v1265
      %v1292 = vpack.c.bf16 %v1270, %v1268
      %v1293 = vpack.c.bf16 %v1271, %v1269
      %v1294 = vpack.c.bf16 %v1274, %v1272
      %v1295 = vpack.c.bf16 %v1275, %v1273
      %v1296 = vpack.c.bf16 %v1278, %v1276
      %v1297 = vpack.c.bf16 %v1279, %v1277
      %v1298 = vpack.c.bf16 %v1282, %v1280
      %v1299 = vpack.c.bf16 %v1283, %v1281
      %v1300 = vld [vmem:[%s9] sm:$0xf]
      %v1301 = vld [vmem:[%s9 + $0x4] sm:$0xf]
      %v1302 = vld [vmem:[%s9 + $0x8] sm:$0xf]
      %v1303 = vld [vmem:[%s9 + $0xc] sm:$0xf]
      %v1304 = vld [vmem:[%s9 + $0x10] sm:$0xf]
      %v1305 = vld [vmem:[%s9 + $0x14] sm:$0xf]
      %v1306 = vld [vmem:[%s9 + $0x18] sm:$0xf]
      %v1307 = vld [vmem:[%s9 + $0x1c] sm:$0xf]
      %v1308 = vld [vmem:[%s9 + $0x20] sm:$0xf]
      %v1309 = vld [vmem:[%s9 + $0x24] sm:$0xf]
      %v1310 = vld [vmem:[%s9 + $0x28] sm:$0xf]
      %v1311 = vld [vmem:[%s9 + $0x2c] sm:$0xf]
      %v1312 = vld [vmem:[%s9 + $0x30] sm:$0xf]
      %v1313 = vld [vmem:[%s9 + $0x34] sm:$0xf]
      %v1314 = vld [vmem:[%s9 + $0x38] sm:$0xf]
      %v1315 = vld [vmem:[%s9 + $0x3c] sm:$0xf]
      %v1316 = vld [vmem:[%s9 + $0x40] sm:$0xf]
      %v1317 = vld [vmem:[%s9 + $0x44] sm:$0xf]
      %v1318 = vld [vmem:[%s9 + $0x48] sm:$0xf]
      %v1319 = vld [vmem:[%s9 + $0x4c] sm:$0xf]
      %v1320 = vld [vmem:[%s9 + $0x50] sm:$0xf]
      %v1321 = vld [vmem:[%s9 + $0x54] sm:$0xf]
      %v1322 = vld [vmem:[%s9 + $0x58] sm:$0xf]
      %v1323 = vld [vmem:[%s9 + $0x5c] sm:$0xf]
      %v1324 = vld [vmem:[%s9 + $0x60] sm:$0xf]
      %v1325 = vld [vmem:[%s9 + $0x64] sm:$0xf]
      %v1326 = vld [vmem:[%s9 + $0x68] sm:$0xf]
      %v1327 = vld [vmem:[%s9 + $0x6c] sm:$0xf]
      %v1328 = vld [vmem:[%s9 + $0x70] sm:$0xf]
      %v1329 = vld [vmem:[%s9 + $0x74] sm:$0xf]
      %v1330 = vld [vmem:[%s9 + $0x78] sm:$0xf]
      %v1331 = vld [vmem:[%s9 + $0x7c] sm:$0xf]
      %v1332 = vld [vmem:[%s10] sm:$0x1]
      %v1334 = vlaneseq
      %v1335 = vshrl.u32 %v1334, 7
      %v1336 = vsub.s32 0, %v1335
      %v1337 = vrot.slane %v1332, %v1336
      %v1371 = vunpack.c.l.b16 %v1300
      %v1372 = vunpack.c.l.b16 %v1301
      %v1373 = vunpack.c.l.b16 %v1302
      %v1374 = vunpack.c.l.b16 %v1303
      %v1375 = vunpack.c.l.b16 %v1304
      %v1376 = vunpack.c.l.b16 %v1305
      %v1377 = vunpack.c.l.b16 %v1306
      %v1378 = vunpack.c.l.b16 %v1307
      %v1379 = vunpack.c.l.b16 %v1308
      %v1380 = vunpack.c.l.b16 %v1309
      %v1381 = vunpack.c.l.b16 %v1310
      %v1382 = vunpack.c.l.b16 %v1311
      %v1383 = vunpack.c.l.b16 %v1312
      %v1384 = vunpack.c.l.b16 %v1313
      %v1385 = vunpack.c.l.b16 %v1314
      %v1386 = vunpack.c.l.b16 %v1315
      %v1387 = vunpack.c.l.b16 %v1316
      %v1388 = vunpack.c.l.b16 %v1317
      %v1389 = vunpack.c.l.b16 %v1318
      %v1390 = vunpack.c.l.b16 %v1319
      %v1391 = vunpack.c.l.b16 %v1320
      %v1392 = vunpack.c.l.b16 %v1321
      %v1393 = vunpack.c.l.b16 %v1322
      %v1394 = vunpack.c.l.b16 %v1323
      %v1395 = vunpack.c.l.b16 %v1324
      %v1396 = vunpack.c.l.b16 %v1325
      %v1397 = vunpack.c.l.b16 %v1326
      %v1398 = vunpack.c.l.b16 %v1327
      %v1399 = vunpack.c.l.b16 %v1328
      %v1400 = vunpack.c.l.b16 %v1329
      %v1401 = vunpack.c.l.b16 %v1330
      %v1402 = vunpack.c.l.b16 %v1331
      %v1403 = vpack.c.b16 %v1372, %v1371
      %v1404 = vpack.c.b16 %v1374, %v1373
      %v1405 = vpack.c.b16 %v1376, %v1375
      %v1406 = vpack.c.b16 %v1378, %v1377
      %v1407 = vpack.c.b16 %v1380, %v1379
      %v1408 = vpack.c.b16 %v1382, %v1381
      %v1409 = vpack.c.b16 %v1384, %v1383
      %v1410 = vpack.c.b16 %v1386, %v1385
      %v1411 = vpack.c.b16 %v1388, %v1387
      %v1412 = vpack.c.b16 %v1390, %v1389
      %v1413 = vpack.c.b16 %v1392, %v1391
      %v1414 = vpack.c.b16 %v1394, %v1393
      %v1415 = vpack.c.b16 %v1396, %v1395
      %v1416 = vpack.c.b16 %v1398, %v1397
      %v1417 = vpack.c.b16 %v1400, %v1399
      %v1418 = vpack.c.b16 %v1402, %v1401
      %1435 = vmatprep.subr.bf16.mxu0 0
      %1436 = vmatpush1.bf16.msra.mxu0 %v1403
      %1437 = vmatprep.subr.bf16.mxu0 0
      %1438 = vmatpush1.bf16.msra.mxu0 %v1404
      %1439 = vmatprep.subr.bf16.mxu0 0
      %1440 = vmatpush1.bf16.msra.mxu0 %v1405
      %1441 = vmatprep.subr.bf16.mxu0 0
      %1442 = vmatpush1.bf16.msra.mxu0 %v1406
      %1443 = vmatprep.subr.bf16.mxu0 0
      %1444 = vmatpush1.bf16.msra.mxu0 %v1407
      %1445 = vmatprep.subr.bf16.mxu0 0
      %1446 = vmatpush1.bf16.msra.mxu0 %v1408
      %1447 = vmatprep.subr.bf16.mxu0 0
      %1448 = vmatpush1.bf16.msra.mxu0 %v1409
      %1449 = vmatprep.subr.bf16.mxu0 0
      %1450 = vmatpush1.bf16.msra.mxu0 %v1410
      %1451 = vmatprep.subr.bf16.mxu0 0
      %1452 = vmatpush1.bf16.msra.mxu0 %v1411
      %1453 = vmatprep.subr.bf16.mxu0 0
      %1454 = vmatpush1.bf16.msra.mxu0 %v1412
      %1455 = vmatprep.subr.bf16.mxu0 0
      %1456 = vmatpush1.bf16.msra.mxu0 %v1413
      %1457 = vmatprep.subr.bf16.mxu0 0
      %1458 = vmatpush1.bf16.msra.mxu0 %v1414
      %1459 = vmatprep.subr.bf16.mxu0 0
      %1460 = vmatpush1.bf16.msra.mxu0 %v1415
      %1461 = vmatprep.subr.bf16.mxu0 0
      %1462 = vmatpush1.bf16.msra.mxu0 %v1416
      %1463 = vmatprep.subr.bf16.mxu0 0
      %1464 = vmatpush1.bf16.msra.mxu0 %v1417
      %1465 = vmatprep.subr.bf16.mxu0 0
      %1466 = vmatpush1.bf16.msra.mxu0 %v1418
      %1467 = vmatprep.mubr.bf16.mxu0 %v1285
      %1468 = vmatmul.mubr.bf16.gmra.mrb[0].mxu0 %v1284
      %v1469 = vpop.f32.mrb[0].mxu0
      %v1470 = vadd.f32 %v1337, %v1469
      %v1471 = vpop.f32.mrb[0].mxu0
      %v1472 = vpop.f32.mrb[0].mxu0
      %v1473 = vadd.f32 %v1337, %v1472
      %v1474 = vpop.f32.mrb[0].mxu0
      %1475 = vmatprep.mubr.bf16.mxu0 %v1287
      %1476 = vmatmul.mubr.bf16.gmra.mrb[0].mxu0 %v1286
      %v1477 = vpop.f32.mrb[0].mxu0
      %v1478 = vadd.f32 %v1337, %v1477
      %v1479 = vpop.f32.mrb[0].mxu0
      %v1480 = vpop.f32.mrb[0].mxu0
      %v1481 = vadd.f32 %v1337, %v1480
      %v1482 = vpop.f32.mrb[0].mxu0
      %1483 = vmatprep.mubr.bf16.mxu0 %v1289
      %1484 = vmatmul.mubr.bf16.gmra.mrb[0].mxu0 %v1288
      %v1485 = vpop.f32.mrb[0].mxu0
      %v1486 = vadd.f32 %v1337, %v1485
      %v1487 = vpop.f32.mrb[0].mxu0
      %v1488 = vpop.f32.mrb[0].mxu0
      %v1489 = vadd.f32 %v1337, %v1488
      %v1490 = vpop.f32.mrb[0].mxu0
      %1491 = vmatprep.mubr.bf16.mxu0 %v1291
      %1492 = vmatmul.mubr.bf16.gmra.mrb[0].mxu0 %v1290
      %v1493 = vpop.f32.mrb[0].mxu0
      %v1494 = vadd.f32 %v1337, %v1493
      %v1495 = vpop.f32.mrb[0].mxu0
      %v1496 = vpop.f32.mrb[0].mxu0
      %v1497 = vadd.f32 %v1337, %v1496
      %v1498 = vpop.f32.mrb[0].mxu0
      %1499 = vmatprep.mubr.bf16.mxu0 %v1293
      %1500 = vmatmul.mubr.bf16.gmra.mrb[0].mxu0 %v1292
      %v1501 = vpop.f32.mrb[0].mxu0
      %v1502 = vadd.f32 %v1337, %v1501
      %v1503 = vpop.f32.mrb[0].mxu0
      %v1504 = vpop.f32.mrb[0].mxu0
      %v1505 = vadd.f32 %v1337, %v1504
      %v1506 = vpop.f32.mrb[0].mxu0
      %1507 = vmatprep.mubr.bf16.mxu0 %v1295
      %1508 = vmatmul.mubr.bf16.gmra.mrb[0].mxu0 %v1294
      %v1509 = vpop.f32.mrb[0].mxu0
      %v1510 = vadd.f32 %v1337, %v1509
      %v1511 = vpop.f32.mrb[0].mxu0
      %v1512 = vpop.f32.mrb[0].mxu0
      %v1513 = vadd.f32 %v1337, %v1512
      %v1514 = vpop.f32.mrb[0].mxu0
      %1515 = vmatprep.mubr.bf16.mxu0 %v1297
      %1516 = vmatmul.mubr.bf16.gmra.mrb[0].mxu0 %v1296
      %v1517 = vpop.f32.mrb[0].mxu0
      %v1518 = vadd.f32 %v1337, %v1517
      %v1519 = vpop.f32.mrb[0].mxu0
      %v1520 = vpop.f32.mrb[0].mxu0
      %v1521 = vadd.f32 %v1337, %v1520
      %v1522 = vpop.f32.mrb[0].mxu0
      %1523 = vmatprep.mubr.bf16.mxu0 %v1299
      %1524 = vmatmul.mubr.bf16.gmra.mrb[0].mxu0 %v1298
      %v1525 = vpop.f32.mrb[0].mxu0
      %v1526 = vadd.f32 %v1337, %v1525
      %v1527 = vpop.f32.mrb[0].mxu0
      %v1528 = vpop.f32.mrb[0].mxu0
      %v1529 = vadd.f32 %v1337, %v1528
      %v1530 = vpop.f32.mrb[0].mxu0
      %1531 = vdwg.mxu0
      %v1532 = vsub.f32 0.0, %v1470
      %v1533 = vsub.f32 0.0, %v1473
      %v1534 = vsub.f32 0.0, %v1478
      %v1535 = vsub.f32 0.0, %v1481
      %v1536 = vsub.f32 0.0, %v1486
      %v1537 = vsub.f32 0.0, %v1489
      %v1538 = vsub.f32 0.0, %v1494
      %v1539 = vsub.f32 0.0, %v1497
      %v1540 = vsub.f32 0.0, %v1502
      %v1541 = vsub.f32 0.0, %v1505
      %v1542 = vsub.f32 0.0, %v1510
      %v1543 = vsub.f32 0.0, %v1513
      %v1544 = vsub.f32 0.0, %v1518
      %v1545 = vsub.f32 0.0, %v1521
      %v1546 = vsub.f32 0.0, %v1526
      %v1547 = vsub.f32 0.0, %v1529
      %v1548 = vmul.f32 %v1532, 1.442695
      %v1549 = vpow.pop %v1548
      %v1550 = vmul.f32 %v1533, 1.442695
      %v1551 = vpow.pop %v1550
      %v1552 = vmul.f32 %v1534, 1.442695
      %v1553 = vpow.pop %v1552
      %v1554 = vmul.f32 %v1535, 1.442695
      %v1555 = vpow.pop %v1554
      %v1556 = vmul.f32 %v1536, 1.442695
      %v1557 = vpow.pop %v1556
      %v1558 = vmul.f32 %v1537, 1.442695
      %v1559 = vpow.pop %v1558
      %v1560 = vmul.f32 %v1538, 1.442695
      %v1561 = vpow.pop %v1560
      %v1562 = vmul.f32 %v1539, 1.442695
      %v1563 = vpow.pop %v1562
      %v1564 = vmul.f32 %v1540, 1.442695
      %v1565 = vpow.pop %v1564
      %v1566 = vmul.f32 %v1541, 1.442695
      %v1567 = vpow.pop %v1566
      %v1568 = vmul.f32 %v1542, 1.442695
      %v1569 = vpow.pop %v1568
      %v1570 = vmul.f32 %v1543, 1.442695
      %v1571 = vpow.pop %v1570
      %v1572 = vmul.f32 %v1544, 1.442695
      %v1573 = vpow.pop %v1572
      %v1574 = vmul.f32 %v1545, 1.442695
      %v1575 = vpow.pop %v1574
      %v1576 = vmul.f32 %v1546, 1.442695
      %v1577 = vpow.pop %v1576
      %v1578 = vmul.f32 %v1547, 1.442695
      %v1579 = vpow.pop %v1578
      %v1580 = vadd.f32 %v1549, 1.0
      %v1581 = vadd.f32 %v1551, 1.0
      %v1582 = vadd.f32 %v1553, 1.0
      %v1583 = vadd.f32 %v1555, 1.0
      %v1584 = vadd.f32 %v1557, 1.0
      %v1585 = vadd.f32 %v1559, 1.0
      %v1586 = vadd.f32 %v1561, 1.0
      %v1587 = vadd.f32 %v1563, 1.0
      %v1588 = vadd.f32 %v1565, 1.0
      %v1589 = vadd.f32 %v1567, 1.0
      %v1590 = vadd.f32 %v1569, 1.0
      %v1591 = vadd.f32 %v1571, 1.0
      %v1592 = vadd.f32 %v1573, 1.0
      %v1593 = vadd.f32 %v1575, 1.0
      %v1594 = vadd.f32 %v1577, 1.0
      %v1595 = vadd.f32 %v1579, 1.0
      %v1596 = vrcp.pop %v1580
      %v1597 = vrcp.pop %v1581
      %v1598 = vrcp.pop %v1582
      %v1599 = vrcp.pop %v1583
      %v1600 = vrcp.pop %v1584
      %v1601 = vrcp.pop %v1585
      %v1602 = vrcp.pop %v1586
      %v1603 = vrcp.pop %v1587
      %v1604 = vrcp.pop %v1588
      %v1605 = vrcp.pop %v1589
      %v1606 = vrcp.pop %v1590
      %v1607 = vrcp.pop %v1591
      %v1608 = vrcp.pop %v1592
      %v1609 = vrcp.pop %v1593
      %v1610 = vrcp.pop %v1594
      %v1611 = vrcp.pop %v1595
      %1612 = vst [vmem:[%s388] sm:$0xff] %v1596
      %1613 = vst [vmem:[%s388 + $0x8] sm:$0xff] %v1597
      %1614 = vst [vmem:[%s388 + $0x10] sm:$0xff] %v1598
      %1615 = vst [vmem:[%s388 + $0x18] sm:$0xff] %v1599
      %1616 = vst [vmem:[%s388 + $0x20] sm:$0xff] %v1600
      %1617 = vst [vmem:[%s388 + $0x28] sm:$0xff] %v1601
      %1618 = vst [vmem:[%s388 + $0x30] sm:$0xff] %v1602
      %1619 = vst [vmem:[%s388 + $0x38] sm:$0xff] %v1603
      %1620 = vst [vmem:[%s388 + $0x40] sm:$0xff] %v1604
      %1621 = vst [vmem:[%s388 + $0x48] sm:$0xff] %v1605
      %1622 = vst [vmem:[%s388 + $0x50] sm:$0xff] %v1606
      %1623 = vst [vmem:[%s388 + $0x58] sm:$0xff] %v1607
      %1624 = vst [vmem:[%s388 + $0x60] sm:$0xff] %v1608
      %1625 = vst [vmem:[%s388 + $0x68] sm:$0xff] %v1609
      %1626 = vst [vmem:[%s388 + $0x70] sm:$0xff] %v1610
      %1627 = vst [vmem:[%s388 + $0x78] sm:$0xff] %v1611
      %s1628 = smul.u32 16, %s22
      %p1629 = scmp.lt.s32.totalorder %s1628, 31
      %s1630 = scalar_select %p1629, %s1628, 31
      %s1631 = smul.addr %s1630, 8
      %s1632 = scalar_lea.vmem %s11, %s1631
      // Predicated region
      $region65: #{linear_generator_forward.1} parent=63 // pred_check
        %p1633 = pneg %p276
      $region66: #{linear_generator_forward.1} parent=63 // pred_check_branch
        %1635 = sbr.rel (%p1633) target = $region68
      $region67: #{linear_generator_forward.1} parent=63 // pred_region
        %s1636 = smul.u32 16, %s22
      $region68: #{linear_generator_forward.1} parent=63 // pred_fallthru
        _
    $region64: #{linear_generator_forward.1} parent=5 // pred_fallthru
      _
    %p1637 = scmp.le.s32.totalorder 2, %s17
    // Predicated region
    $region69: #{linear_generator_forward.1} parent=5 // pred_check
      %p1638 = pneg %p1637
    $region70: #{linear_generator_forward.1} parent=5 // pred_check_branch
      %1640 = sbr.rel (%p1638) target = $region72
    $region71: #{linear_generator_forward.1} parent=5 // pred_region
      %s1641 = ssub.s32 %s17, 2
      // Predicated region
      $region73: #{linear_generator_forward.1} parent=71 // pred_check
        %p1642 = pneg %p282
      $region74: #{linear_generator_forward.1} parent=71 // pred_check_branch
        %1644 = sbr.rel (%p1642) target = $region76
      $region75: #{linear_generator_forward.1} parent=71 // pred_region
        %s1645 = smul.u32 16, %s23
        %p1646 = scmp.lt.s32.totalorder %s1645, 31
        %s1647 = scalar_select %p1646, %s1645, 31
        %s1648 = smul.addr %s1647, 8
        %s1649 = scalar_lea.vmem %s11, %s1648
      $region76: #{linear_generator_forward.1} parent=71 // pred_fallthru
        _
    $region72: #{linear_generator_forward.1} parent=5 // pred_fallthru
      _
  $region6: #{linear_generator_forward.1} parent=0 // loop_footer
    %s21 = sadd.s32 1, %s17
  $region7: #{linear_generator_forward.1} parent=0 // loop_footer_branch
    %16 = sbr.rel target = $region3
  $region8: #{linear_generator_forward.1} parent=0 // loop_exit
    _

</llo_original>
